<compile_context>
chip_gen: v6e
topology: v6e:2x2x1
jax: 0.10.0
libtpu: 0.0.40
codegen_flags: <defaults>
</compile_context>

<pallas_src>
import functools

import jax
import jax.numpy as jnp
from jax.experimental import pallas as pl
from jax.experimental.pallas import tpu as pltpu

IN_FEATURES = 2
OUT_FEATURES = 1
NUM_NEURONS = 64
NUM_HIDDEN_MM = 3      # layers 2..4 (the 64x64 MXU matmuls)


def _mlp_kernel(x_ref, w1_ref, wh_ref, b_ref, wo_ref, o_ref):
    """Fused 2->64->64->64->64->1 tanh MLP on one feature-major batch tile.

    x_ref : (IN_FEATURES, TN)             f32  batch tile (lane-dense)
    w1_ref: (NUM_NEURONS, IN_FEATURES)    f32  layer-1 weight (kept f32)
    wh_ref: (3, NUM_NEURONS, NUM_NEURONS) cdt  stacked layer-2..4 weights
    b_ref : (5, NUM_NEURONS, 1)           f32  stacked biases (b1..b4, bo zero-padded)
    wo_ref: (OUT_FEATURES, NUM_NEURONS)   cdt  output weight
    o_ref : (OUT_FEATURES, TN)            f32  output tile
    """
    cdt = wh_ref.dtype                       # MXU / tanh compute dtype (f32 or bf16)

    x = x_ref[...]                           # (2, TN)  f32
    w1 = w1_ref[...]                         # (64, 2)  f32
    b = b_ref[...]                           # (5, 64, 1) f32

    # --- layer 1: K = 2 contraction as VPU broadcast FMAs (skip the MXU) ---
    z = b[0] + w1[:, 0:1] * x[0:1, :] + w1[:, 1:2] * x[1:2, :]   # (64, TN) f32
    h = jnp.tanh(z.astype(cdt))              # tanh in compute dtype (bf16 EUP on v6e/v7x)

    # --- layers 2..4: 64x64 MXU matmuls; bias add + tanh stay in compute dtype ---
    for l in range(NUM_HIDDEN_MM):
        zl = jnp.dot(wh_ref[l], h, preferred_element_type=cdt) + b[1 + l].astype(cdt)
        h = jnp.tanh(zl)

    # --- linear output layer: (1, 64) @ (64, TN) -> (1, TN), f32 accumulation ---
    out = jnp.dot(wo_ref[...], h, preferred_element_type=jnp.float32) + b[4, 0:1, :]
    o_ref[...] = out.astype(o_ref.dtype)     # lane-dense store


def _pick_tile_n(n_rows):
    """Lane-aligned tile giving >=2 grid steps (v7x has 2 TCs), capped at 4096 so the
    f32 (64, tile) intermediates stay well inside v5e's 16 MiB default scoped VMEM."""
    half = (n_rows + 1) // 2
    t = ((half + 127) // 128) * 128
    return max(128, min(t, 4096))


@functools.partial(jax.jit, static_argnames=("tile_n", "compute_dtype"))
def net_forward(x, params, *, tile_n=None, compute_dtype=jnp.float32):
    """Fused MLP forward. x: (N, IN_FEATURES) f32 -> (N, OUT_FEATURES) f32.

    tile_n must be a multiple of 128 (None -> auto). compute_dtype sets the hidden-layer
    MXU/tanh dtype: jnp.bfloat16 on v6e/v7x for the fast path, f32 elsewhere. Layer-1
    params and the final accumulation/output are always f32."""
    (w1, b1), (w2, b2), (w3, b3), (w4, b4), (wo, bo) = params
    N, F = x.shape
    assert F == IN_FEATURES
    if tile_n is None:
        tile_n = _pick_tile_n(N)
    assert tile_n % 128 == 0

    n_pad = (-N) % tile_n
    Np = N + n_pad
    # Feature-major, zero-padded batch: (IN_FEATURES, Np); Np multiple of 128 keeps
    # every block DMA and the output store lane-dense (no masked stores).
    x_t = jnp.pad(x.astype(jnp.float32).T, ((0, 0), (0, n_pad)))

    # Pack 10 weight/bias operands into 4 arrays (less per-step operand bookkeeping).
    w1f = w1.astype(jnp.float32)                                       # (64, 2)  f32
    wh = jnp.stack([w2, w3, w4]).astype(compute_dtype)                 # (3, 64, 64)
    bo_pad = jnp.pad(bo, ((0, NUM_NEURONS - OUT_FEATURES), (0, 0)))    # (64, 1)
    bs = jnp.stack([b1, b2, b3, b4, bo_pad]).astype(jnp.float32)       # (5, 64, 1) f32
    woc = wo.astype(compute_dtype)                                     # (1, 64)

    grid = (Np // tile_n,)

    def const_spec(a):   # whole (small) array VMEM-resident, same block every step
        ndim = a.ndim
        return pl.BlockSpec(a.shape, lambda i: (0,) * ndim)

    in_specs = [
        pl.BlockSpec((IN_FEATURES, tile_n), lambda i: (0, i)),
        const_spec(w1f),
        const_spec(wh),
        const_spec(bs),
        const_spec(woc),
    ]
    out_spec = pl.BlockSpec((OUT_FEATURES, tile_n), lambda i: (0, i))

    out_t = pl.pallas_call(
        _mlp_kernel,
        out_shape=jax.ShapeDtypeStruct((OUT_FEATURES, Np), jnp.float32),
        grid_spec=pltpu.PrefetchScalarGridSpec(
            num_scalar_prefetch=0,
            grid=grid,
            in_specs=in_specs,
            out_specs=out_spec,
        ),
        compiler_params=pltpu.CompilerParams(
            dimension_semantics=("parallel",)),
    )(x_t, w1f, wh, bs, woc)

    # (1, Np) -> (N, 1) via slice + reshape (no transpose on the output path).
    return out_t[0, :N][:, None]


def init_params(key):
    """CustomLinearLayer-style init (weights ~ N(0,1)), stored kernel-side as
    W: (out, in), b: (out, 1). The module inits bias to zeros; small non-zero values
    are used here so the bias-broadcast path is actually exercised by the check."""
    dims = [(IN_FEATURES, NUM_NEURONS),
            (NUM_NEURONS, NUM_NEURONS),
            (NUM_NEURONS, NUM_NEURONS),
            (NUM_NEURONS, NUM_NEURONS),
            (NUM_NEURONS, OUT_FEATURES)]
    params = []
    for fan_in, fan_out in dims:
        key, kw, kb = jax.random.split(key, 3)
        w = jax.random.normal(kw, (fan_out, fan_in), jnp.float32)
        b = 0.01 * jax.random.normal(kb, (fan_out, 1), jnp.float32)
        params.append((w, b))
    return params


def net_forward_ref(x, params):
    """Pure-JAX reference in the original batch-major formulation."""
    (w1, b1), (w2, b2), (w3, b3), (w4, b4), (wo, bo) = params
    h = jnp.tanh(x @ w1.T + b1.T)
    h = jnp.tanh(h @ w2.T + b2.T)
    h = jnp.tanh(h @ w3.T + b3.T)
    h = jnp.tanh(h @ w4.T + b4.T)
    return h @ wo.T + bo.T


if __name__ == "__main__":
    key = jax.random.PRNGKey(0)
    k_in, k_par = jax.random.split(key)

    N = 2048                 # (x, t) collocation points; auto tile_n=1024 -> 2-step grid
    x = jax.random.uniform(k_in, (N, IN_FEATURES), jnp.float32, -1.0, 1.0)
    params = init_params(k_par)

    ref = net_forward_ref(x, params)
    ref_scale = 1.0 + float(jnp.max(jnp.abs(ref)))

    # f32 path (works on all generations), tight check.
    out = jax.block_until_ready(net_forward(x, params, compute_dtype=jnp.float32))
    assert out.shape == (N, OUT_FEATURES)
    assert float(jnp.max(jnp.abs(out - ref))) < 1e-4 * ref_scale, "f32 mismatch vs reference"

    # bf16 hidden-layer path (v6e/v7x fast path: bf16 MXU + bf16 tanh), loose check.
    out_bf16 = jax.block_until_ready(net_forward(x, params, compute_dtype=jnp.bfloat16))
    assert float(jnp.max(jnp.abs(out_bf16 - ref))) < 5e-2 * ref_scale, "bf16 mismatch vs reference"

    # Batch not a multiple of the tile: exercised via internal zero-padding (auto tile 512).
    out_odd = jax.block_until_ready(net_forward(x[:1000], params))
    assert out_odd.shape == (1000, OUT_FEATURES)
    assert float(jnp.max(jnp.abs(out_odd - ref[:1000]))) < 1e-4 * ref_scale, "padded-batch mismatch"

    print("KERNEL_OK")
</pallas_src>

<mosaic_0001>
module attributes {stable_mosaic.version = 11 : i64} {
  func.func @_mlp_kernel(%arg0: i32, %arg1: memref<2x1024xf32, #tpu.memory_space<vmem>>, %arg2: memref<64x2xf32, #tpu.memory_space<vmem>>, %arg3: memref<3x64x64xf32, #tpu.memory_space<vmem>>, %arg4: memref<5x64x1xf32, #tpu.memory_space<vmem>>, %arg5: memref<1x64xf32, #tpu.memory_space<vmem>>, %arg6: memref<1x1024xf32, #tpu.memory_space<vmem>>) attributes {dimension_semantics = [#tpu.dimension_semantics<parallel>], iteration_bounds = array<i64: 2>, scalar_prefetch = 0 : i64, scratch_operands = 0 : i64, tpu.core_type = #tpu.core_type<tc>, window_params = [{transform_indices = @transform_0, window_bounds = array<i64: 2, 1024>}, {pipeline_mode = #tpu.pipeline_mode<synchronous>, transform_indices = @transform_1, window_bounds = array<i64: 64, 2>}, {pipeline_mode = #tpu.pipeline_mode<synchronous>, transform_indices = @transform_2, window_bounds = array<i64: 3, 64, 64>}, {pipeline_mode = #tpu.pipeline_mode<synchronous>, transform_indices = @transform_3, window_bounds = array<i64: 5, 64, 1>}, {pipeline_mode = #tpu.pipeline_mode<synchronous>, transform_indices = @transform_4, window_bounds = array<i64: 1, 64>}, {transform_indices = @transform_5, window_bounds = array<i64: 1, 1024>}]} {
    %c0 = arith.constant 0 : index
    %c0_0 = arith.constant 0 : index
    %0 = vector.load %arg1[%c0, %c0_0] : memref<2x1024xf32, #tpu.memory_space<vmem>>, vector<2x1024xf32>
    %c0_1 = arith.constant 0 : index
    %c0_2 = arith.constant 0 : index
    %1 = vector.load %arg2[%c0_1, %c0_2] : memref<64x2xf32, #tpu.memory_space<vmem>>, vector<64x2xf32>
    %c0_3 = arith.constant 0 : index
    %c0_4 = arith.constant 0 : index
    %c0_5 = arith.constant 0 : index
    %2 = vector.load %arg4[%c0_3, %c0_4, %c0_5] : memref<5x64x1xf32, #tpu.memory_space<vmem>>, vector<5x64x1xf32>
    %3 = vector.extract_strided_slice %2 {offsets = [0, 0, 0], sizes = [1, 64, 1], strides = [1, 1, 1]} : vector<5x64x1xf32> to vector<1x64x1xf32>
    %4 = vector.shape_cast %3 : vector<1x64x1xf32> to vector<64x1xf32>
    %5 = vector.extract_strided_slice %1 {offsets = [0, 0], sizes = [64, 1], strides = [1, 1]} : vector<64x2xf32> to vector<64x1xf32>
    %6 = vector.extract_strided_slice %0 {offsets = [0, 0], sizes = [1, 1024], strides = [1, 1]} : vector<2x1024xf32> to vector<1x1024xf32>
    %7 = vector.broadcast %5 : vector<64x1xf32> to vector<64x1024xf32>
    %8 = vector.broadcast %6 : vector<1x1024xf32> to vector<64x1024xf32>
    %9 = arith.mulf %7, %8 : vector<64x1024xf32>
    %10 = vector.broadcast %4 : vector<64x1xf32> to vector<64x1024xf32>
    %11 = arith.addf %10, %9 : vector<64x1024xf32>
    %12 = vector.extract_strided_slice %1 {offsets = [0, 1], sizes = [64, 1], strides = [1, 1]} : vector<64x2xf32> to vector<64x1xf32>
    %13 = vector.extract_strided_slice %0 {offsets = [1, 0], sizes = [1, 1024], strides = [1, 1]} : vector<2x1024xf32> to vector<1x1024xf32>
    %14 = vector.broadcast %12 : vector<64x1xf32> to vector<64x1024xf32>
    %15 = vector.broadcast %13 : vector<1x1024xf32> to vector<64x1024xf32>
    %16 = arith.mulf %14, %15 : vector<64x1024xf32>
    %17 = arith.addf %11, %16 : vector<64x1024xf32>
    %18 = math.tanh %17 : vector<64x1024xf32>
    %c0_6 = arith.constant 0 : index
    %c0_7 = arith.constant 0 : index
    %c0_8 = arith.constant 0 : index
    %19 = vector.load %arg3[%c0_6, %c0_7, %c0_8] : memref<3x64x64xf32, #tpu.memory_space<vmem>>, vector<1x64x64xf32>
    %20 = vector.shape_cast %19 : vector<1x64x64xf32> to vector<64x64xf32>
    %cst = arith.constant dense<0.000000e+00> : vector<64x1024xf32>
    %21 = tpu.matmul %20, %18, %cst {dimension_numbers = #tpu.dot_dimension_numbers<[1], [0], [0], [1], [0, 0, 1, 1], [], []>} : vector<64x64xf32>, vector<64x1024xf32>, vector<64x1024xf32> -> vector<64x1024xf32>
    %22 = vector.extract_strided_slice %2 {offsets = [1, 0, 0], sizes = [1, 64, 1], strides = [1, 1, 1]} : vector<5x64x1xf32> to vector<1x64x1xf32>
    %23 = vector.shape_cast %22 : vector<1x64x1xf32> to vector<64x1xf32>
    %24 = vector.broadcast %23 : vector<64x1xf32> to vector<64x1024xf32>
    %25 = arith.addf %21, %24 : vector<64x1024xf32>
    %26 = math.tanh %25 : vector<64x1024xf32>
    %c1 = arith.constant 1 : index
    %c0_9 = arith.constant 0 : index
    %c0_10 = arith.constant 0 : index
    %27 = vector.load %arg3[%c1, %c0_9, %c0_10] : memref<3x64x64xf32, #tpu.memory_space<vmem>>, vector<1x64x64xf32>
    %28 = vector.shape_cast %27 : vector<1x64x64xf32> to vector<64x64xf32>
    %cst_11 = arith.constant dense<0.000000e+00> : vector<64x1024xf32>
    %29 = tpu.matmul %28, %26, %cst_11 {dimension_numbers = #tpu.dot_dimension_numbers<[1], [0], [0], [1], [0, 0, 1, 1], [], []>} : vector<64x64xf32>, vector<64x1024xf32>, vector<64x1024xf32> -> vector<64x1024xf32>
    %30 = vector.extract_strided_slice %2 {offsets = [2, 0, 0], sizes = [1, 64, 1], strides = [1, 1, 1]} : vector<5x64x1xf32> to vector<1x64x1xf32>
    %31 = vector.shape_cast %30 : vector<1x64x1xf32> to vector<64x1xf32>
    %32 = vector.broadcast %31 : vector<64x1xf32> to vector<64x1024xf32>
    %33 = arith.addf %29, %32 : vector<64x1024xf32>
    %34 = math.tanh %33 : vector<64x1024xf32>
    %c2 = arith.constant 2 : index
    %c0_12 = arith.constant 0 : index
    %c0_13 = arith.constant 0 : index
    %35 = vector.load %arg3[%c2, %c0_12, %c0_13] : memref<3x64x64xf32, #tpu.memory_space<vmem>>, vector<1x64x64xf32>
    %36 = vector.shape_cast %35 : vector<1x64x64xf32> to vector<64x64xf32>
    %cst_14 = arith.constant dense<0.000000e+00> : vector<64x1024xf32>
    %37 = tpu.matmul %36, %34, %cst_14 {dimension_numbers = #tpu.dot_dimension_numbers<[1], [0], [0], [1], [0, 0, 1, 1], [], []>} : vector<64x64xf32>, vector<64x1024xf32>, vector<64x1024xf32> -> vector<64x1024xf32>
    %38 = vector.extract_strided_slice %2 {offsets = [3, 0, 0], sizes = [1, 64, 1], strides = [1, 1, 1]} : vector<5x64x1xf32> to vector<1x64x1xf32>
    %39 = vector.shape_cast %38 : vector<1x64x1xf32> to vector<64x1xf32>
    %40 = vector.broadcast %39 : vector<64x1xf32> to vector<64x1024xf32>
    %41 = arith.addf %37, %40 : vector<64x1024xf32>
    %42 = math.tanh %41 : vector<64x1024xf32>
    %c0_15 = arith.constant 0 : index
    %c0_16 = arith.constant 0 : index
    %43 = vector.load %arg5[%c0_15, %c0_16] : memref<1x64xf32, #tpu.memory_space<vmem>>, vector<1x64xf32>
    %cst_17 = arith.constant dense<0.000000e+00> : vector<1x1024xf32>
    %44 = tpu.matmul %43, %42, %cst_17 {dimension_numbers = #tpu.dot_dimension_numbers<[1], [0], [0], [1], [0, 0, 1, 1], [], []>} : vector<1x64xf32>, vector<64x1024xf32>, vector<1x1024xf32> -> vector<1x1024xf32>
    %45 = vector.extract_strided_slice %2 {offsets = [4, 0, 0], sizes = [1, 1, 1], strides = [1, 1, 1]} : vector<5x64x1xf32> to vector<1x1x1xf32>
    %46 = vector.shape_cast %45 : vector<1x1x1xf32> to vector<1x1xf32>
    %47 = vector.broadcast %46 : vector<1x1xf32> to vector<1x1024xf32>
    %48 = arith.addf %44, %47 : vector<1x1024xf32>
    %c0_18 = arith.constant 0 : index
    %c0_19 = arith.constant 0 : index
    %49 = vector.load %arg6[%c0_18, %c0_19] : memref<1x1024xf32, #tpu.memory_space<vmem>>, vector<1x1024xf32>
    tpu.vector_store %arg6[%c0_18, %c0_19], %48 {strides = array<i32>} : memref<1x1024xf32, #tpu.memory_space<vmem>>, vector<1x1024xf32>,
    return
  }
  func.func @transform_0(%arg0: i32) -> (i32, i32) {
    %c0_i32 = arith.constant 0 : i32
    %c0_i32_0 = arith.constant 0 : i32
    return %c0_i32, %arg0 : i32, i32
  }
  func.func @transform_1(%arg0: i32) -> (i32, i32) {
    %c0_i32 = arith.constant 0 : i32
    %c0_i32_0 = arith.constant 0 : i32
    %c0_i32_1 = arith.constant 0 : i32
    return %c0_i32, %c0_i32_0 : i32, i32
  }
  func.func @transform_2(%arg0: i32) -> (i32, i32, i32) {
    %c0_i32 = arith.constant 0 : i32
    %c0_i32_0 = arith.constant 0 : i32
    %c0_i32_1 = arith.constant 0 : i32
    %c0_i32_2 = arith.constant 0 : i32
    return %c0_i32, %c0_i32_0, %c0_i32_1 : i32, i32, i32
  }
  func.func @transform_3(%arg0: i32) -> (i32, i32, i32) {
    %c0_i32 = arith.constant 0 : i32
    %c0_i32_0 = arith.constant 0 : i32
    %c0_i32_1 = arith.constant 0 : i32
    %c0_i32_2 = arith.constant 0 : i32
    return %c0_i32, %c0_i32_0, %c0_i32_1 : i32, i32, i32
  }
  func.func @transform_4(%arg0: i32) -> (i32, i32) {
    %c0_i32 = arith.constant 0 : i32
    %c0_i32_0 = arith.constant 0 : i32
    %c0_i32_1 = arith.constant 0 : i32
    return %c0_i32, %c0_i32_0 : i32, i32
  }
  func.func @transform_5(%arg0: i32) -> (i32, i32) {
    %c0_i32 = arith.constant 0 : i32
    %c0_i32_0 = arith.constant 0 : i32
    return %c0_i32, %arg0 : i32, i32
  }
}

</mosaic_0001>

<llo_original>
// kernel: net_forward.1
$region0: #{net_forward.1}
  #allocation0 [shape = 'u32[]', space=smem, size = 0x4, offset = 0x4, fixed_abs, tag = 'smem constant byte address 0x4 - core index']
  #allocation1 [shape = 'u32[144,128]{1,0:T(1,128)}', space=vmem, size = 0x12000, scoped, tag = 'internal scratch']
  %s0 = inlined_call_operand.vmem [shape: f32[2,2048], index: 0, kind: input, shape index: {}]
  %s1 = inlined_call_operand.vmem [shape: f32[64,2], index: 1, kind: input, shape index: {}]
  %s2 = inlined_call_operand.vmem [shape: f32[3,64,64], index: 2, kind: input, shape index: {}]
  %s3 = inlined_call_operand.vmem [shape: f32[5,64,1], index: 3, kind: input, shape index: {}]
  %s4 = inlined_call_operand.vmem [shape: f32[1,64], index: 4, kind: input, shape index: {}]
  %s5 = inlined_call_operand.hbm [shape: f32[1,2048], index: 5, kind: output, shape index: {}]
  %s6 = sld [smem:[#allocation0]]
  $region53: #{net_forward.1} parent=0
    _
  %s8 = ssub.s32 1, %s6
  %s9 = scalar_select 0, %s8, %s6
  $region1: #{net_forward.1} parent=0
    #allocation2 [shape = 'u8[8192]{0}', space=vmem, size = 0x2000, scoped, tag = 'output window, operand 0']
    #allocation3 [shape = 's32[2]{0}', space=sflag, size = 0x8, scoped, tag = 'scoped memory for net_forward.1']
    %10 = vsyncpa [#allocation3], 0
    %s11 = scalar_lea.sflag [#allocation3], 1
    %12 = vsyncpa %s11, 0
    loop: start=0, step=1, limit=4
    $region2: #{net_forward.1} parent=1 // loop_pre_header
      _
    $region3: #{net_forward.1} parent=1 // loop_header
      %s14 = sphi 0, %s18
      %p15 = scmp.ge.s32.totalorder %s14, 4
      %s24 = sphi 0, %s26
      %s27 = sphi 0, %s24
      %s28 = sphi 0, %s27
      %s44 = sphi 0, %s28
      %s48 = sphi 0, %s48
      %s50 = sphi 0, %s48
      %s51 = sphi 0, %s50
      %s65 = sphi 0, %s51
      %s69 = sphi 0, %s69
      %s71 = sphi 0, %s69
      %s72 = sphi 0, %s71
      %s86 = sphi 0, %s72
      %s90 = sphi 0, %s90
      %s92 = sphi 0, %s90
      %s93 = sphi 0, %s92
      %s107 = sphi 0, %s93
      %s111 = sphi 0, %s111
      %s113 = sphi 0, %s111
      %s114 = sphi 0, %s113
      %s128 = sphi 0, %s114
      %s134 = sphi 0, %s136
      %s137 = sphi 0, %s134
      %s138 = sphi 0, %s137
      %s154 = sphi 0, %s138
    $region4: #{net_forward.1} parent=1 // loop_header_branch
      %17 = sbr.rel (%p15) target = $region8
    $region5: #{net_forward.1} parent=1 // loop_body
      %s19 = ssub.s32 %s14, 1
      %s20 = ssub.s32 %s14, 2
      %s21 = sadd.s32 %s14, 1
      %s22 = ssub.s32 %s14, %s21
      %p23 = scmp.eq.s32.totalorder %s22, 0
      %s25 = sadd.s32 %s24, 1
      %s26 = scalar_select %p23, %s24, %s25
      %p29 = pneg %p23
      %p30 = scmp.eq.s32.totalorder %s14, 1
      %p31 = por %p29, %p30
      %p32 = scmp.ne.s32.totalorder %s24, %s27
      %p33 = scmp.eq.s32.totalorder %s14, 0
      %p34 = por %p32, %p33
      %p35 = scmp.ne.s32.totalorder %s24, %s27
      %p36 = scmp.eq.s32.totalorder %s19, 1
      %p37 = por %p35, %p36
      %p38 = scmp.ne.s32.totalorder %s27, %s28
      %p39 = scmp.eq.s32.totalorder %s19, 0
      %p40 = por %p38, %p39
      %p41 = scmp.ne.s32.totalorder %s27, %s28
      %p42 = scmp.eq.s32.totalorder %s20, 1
      %p43 = por %p41, %p42
      %p45 = scmp.ne.s32.totalorder %s28, %s44
      %p46 = scmp.eq.s32.totalorder %s20, 0
      %p47 = por %p45, %p46
      %s49 = sadd.s32 %s48, 1
      %p52 = scmp.eq.s32.totalorder %s14, 1
      %p53 = scmp.ne.s32.totalorder %s48, %s50
      %p54 = scmp.eq.s32.totalorder %s14, 0
      %p55 = por %p53, %p54
      %p56 = scmp.ne.s32.totalorder %s48, %s50
      %p57 = scmp.eq.s32.totalorder %s19, 1
      %p58 = por %p56, %p57
      %p59 = scmp.ne.s32.totalorder %s50, %s51
      %p60 = scmp.eq.s32.totalorder %s19, 0
      %p61 = por %p59, %p60
      %p62 = scmp.ne.s32.totalorder %s50, %s51
      %p63 = scmp.eq.s32.totalorder %s20, 1
      %p64 = por %p62, %p63
      %p66 = scmp.ne.s32.totalorder %s51, %s65
      %p67 = scmp.eq.s32.totalorder %s20, 0
      %p68 = por %p66, %p67
      %s70 = sadd.s32 %s69, 1
      %p73 = scmp.eq.s32.totalorder %s14, 1
      %p74 = scmp.ne.s32.totalorder %s69, %s71
      %p75 = scmp.eq.s32.totalorder %s14, 0
      %p76 = por %p74, %p75
      %p77 = scmp.ne.s32.totalorder %s69, %s71
      %p78 = scmp.eq.s32.totalorder %s19, 1
      %p79 = por %p77, %p78
      %p80 = scmp.ne.s32.totalorder %s71, %s72
      %p81 = scmp.eq.s32.totalorder %s19, 0
      %p82 = por %p80, %p81
      %p83 = scmp.ne.s32.totalorder %s71, %s72
      %p84 = scmp.eq.s32.totalorder %s20, 1
      %p85 = por %p83, %p84
      %p87 = scmp.ne.s32.totalorder %s72, %s86
      %p88 = scmp.eq.s32.totalorder %s20, 0
      %p89 = por %p87, %p88
      %s91 = sadd.s32 %s90, 1
      %p94 = scmp.eq.s32.totalorder %s14, 1
      %p95 = scmp.ne.s32.totalorder %s90, %s92
      %p96 = scmp.eq.s32.totalorder %s14, 0
      %p97 = por %p95, %p96
      %p98 = scmp.ne.s32.totalorder %s90, %s92
      %p99 = scmp.eq.s32.totalorder %s19, 1
      %p100 = por %p98, %p99
      %p101 = scmp.ne.s32.totalorder %s92, %s93
      %p102 = scmp.eq.s32.totalorder %s19, 0
      %p103 = por %p101, %p102
      %p104 = scmp.ne.s32.totalorder %s92, %s93
      %p105 = scmp.eq.s32.totalorder %s20, 1
      %p106 = por %p104, %p105
      %p108 = scmp.ne.s32.totalorder %s93, %s107
      %p109 = scmp.eq.s32.totalorder %s20, 0
      %p110 = por %p108, %p109
      %s112 = sadd.s32 %s111, 1
      %p115 = scmp.eq.s32.totalorder %s14, 1
      %p116 = scmp.ne.s32.totalorder %s111, %s113
      %p117 = scmp.eq.s32.totalorder %s14, 0
      %p118 = por %p116, %p117
      %p119 = scmp.ne.s32.totalorder %s111, %s113
      %p120 = scmp.eq.s32.totalorder %s19, 1
      %p121 = por %p119, %p120
      %p122 = scmp.ne.s32.totalorder %s113, %s114
      %p123 = scmp.eq.s32.totalorder %s19, 0
      %p124 = por %p122, %p123
      %p125 = scmp.ne.s32.totalorder %s113, %s114
      %p126 = scmp.eq.s32.totalorder %s20, 1
      %p127 = por %p125, %p126
      %p129 = scmp.ne.s32.totalorder %s114, %s128
      %p130 = scmp.eq.s32.totalorder %s20, 0
      %p131 = por %p129, %p130
      %s132 = ssub.s32 %s14, %s21
      %p133 = scmp.eq.s32.totalorder %s132, 0
      %s135 = sadd.s32 %s134, 1
      %s136 = scalar_select %p133, %s134, %s135
      %p139 = pneg %p133
      %p140 = scmp.eq.s32.totalorder %s14, 1
      %p141 = por %p139, %p140
      %p142 = scmp.ne.s32.totalorder %s134, %s137
      %p143 = scmp.eq.s32.totalorder %s14, 0
      %p144 = por %p142, %p143
      %p145 = scmp.ne.s32.totalorder %s134, %s137
      %p146 = scmp.eq.s32.totalorder %s19, 1
      %p147 = por %p145, %p146
      %p148 = scmp.ne.s32.totalorder %s137, %s138
      %p149 = scmp.eq.s32.totalorder %s19, 0
      %p150 = por %p148, %p149
      %p151 = scmp.ne.s32.totalorder %s137, %s138
      %p152 = scmp.eq.s32.totalorder %s20, 1
      %p153 = por %p151, %p152
      %p155 = scmp.ne.s32.totalorder %s138, %s154
      %p156 = scmp.eq.s32.totalorder %s20, 0
      %p157 = por %p155, %p156
      %p158 = scmp.le.s32.totalorder 1, %s14
      %p159 = scmp.lt.s32.totalorder %s14, 3
      %p160 = pnand %p158, %p159
      %p161 = pneg %p160
      // Predicated region
      $region9: #{net_forward.1} parent=5 // pred_check
        _
      $region10: #{net_forward.1} parent=5 // pred_check_branch
        %163 = sbr.rel (%p160) target = $region12
      $region11: #{net_forward.1} parent=5 // pred_region
        %s164 = ssub.s32 %s14, 1
        // Predicated region
        $region13: #{net_forward.1} parent=11 // pred_check
          %p165 = pneg %p61
        $region14: #{net_forward.1} parent=11 // pred_check_branch
          %167 = sbr.rel (%p165) target = $region16
        $region15: #{net_forward.1} parent=11 // pred_region
          _
        $region16: #{net_forward.1} parent=11 // pred_fallthru
          _
        // Predicated region
        $region17: #{net_forward.1} parent=11 // pred_check
          %p168 = pneg %p82
        $region18: #{net_forward.1} parent=11 // pred_check_branch
          %170 = sbr.rel (%p168) target = $region20
        $region19: #{net_forward.1} parent=11 // pred_region
          _
        $region20: #{net_forward.1} parent=11 // pred_fallthru
          _
        // Predicated region
        $region21: #{net_forward.1} parent=11 // pred_check
          %p171 = pneg %p103
        $region22: #{net_forward.1} parent=11 // pred_check_branch
          %173 = sbr.rel (%p171) target = $region24
        $region23: #{net_forward.1} parent=11 // pred_region
          _
        $region24: #{net_forward.1} parent=11 // pred_fallthru
          _
        // Predicated region
        $region25: #{net_forward.1} parent=11 // pred_check
          %p174 = pneg %p124
        $region26: #{net_forward.1} parent=11 // pred_check_branch
          %176 = sbr.rel (%p174) target = $region28
        $region27: #{net_forward.1} parent=11 // pred_region
          _
        $region28: #{net_forward.1} parent=11 // pred_fallthru
          _
      $region12: #{net_forward.1} parent=5 // pred_fallthru
        _
      %p177 = scmp.lt.s32.totalorder %s14, 2
      // Predicated region
      $region29: #{net_forward.1} parent=5 // pred_check
        %p178 = pneg %p177
      $region30: #{net_forward.1} parent=5 // pred_check_branch
        %180 = sbr.rel (%p178) target = $region32
      $region31: #{net_forward.1} parent=5 // pred_region
        // Predicated region
        $region33: #{net_forward.1} parent=31 // pred_check
          %p181 = pneg %p34
        $region34: #{net_forward.1} parent=31 // pred_check_branch
          %183 = sbr.rel (%p181) target = $region36
        $region35: #{net_forward.1} parent=31 // pred_region
          %s184 = smul.u32 8, %s14
          %p185 = scmp.lt.s32.totalorder %s184, 15
          %s186 = scalar_select %p185, %s184, 15
          %s187 = smul.addr %s186, 2
          %s188 = scalar_lea.vmem %s0, %s187
          %s189 = smul.u32 8, %s14
        $region36: #{net_forward.1} parent=31 // pred_fallthru
          _
      $region32: #{net_forward.1} parent=5 // pred_fallthru
        _
      %p190 = scmp.le.s32.totalorder 1, %s14
      %p191 = scmp.lt.s32.totalorder %s14, 3
      %p192 = pnand %p190, %p191
      %p193 = pneg %p192
      // Predicated region
      $region37: #{net_forward.1} parent=5 // pred_check
        _
      $region38: #{net_forward.1} parent=5 // pred_check_branch
        %195 = sbr.rel (%p192) target = $region40
      $region39: #{net_forward.1} parent=5 // pred_region
        %s196 = ssub.s32 %s14, 1
        %s197 = smul.u32 8, %s19
        %p198 = scmp.lt.s32.totalorder %s197, 15
        %s199 = scalar_select %p198, %s197, 15
        %s200 = smul.addr %s199, 2
        %s201 = scalar_lea.vmem %s0, %s200
        %p202 = pneg %p40
        %p203 = pneg %p37
        %p204 = pneg %p61
        %p205 = pneg %p58
        %p206 = pneg %p82
        %p207 = pneg %p79
        %p208 = pneg %p103
        %p209 = pneg %p100
        %p210 = pneg %p124
        %p211 = pneg %p121
        %p212 = pneg %p150
        %p213 = pneg %p147
        %s214 = sand.u32 %s137, 1
        %s215 = scalar_lea.sflag [#allocation3], %s214
        %s216 = sand.u32 %s137, 1
        %s217 = smul.addr %s216, 8
        %s218 = scalar_lea.vmem [#allocation2], %s217
        %s219 = smul.u32 8, %s19
        %p220 = scmp.lt.s32.totalorder %s219, 15
        %s221 = scalar_select %p220, %s219, 15
        %s222 = smul.addr %s221, 2
        %s223 = scalar_lea.vmem %s0, %s222
        %s224 = smul.u32 8, %s19
        %s225 = smul.u32 8, %s19
        %v226 = vld [vmem:[%s223] sm:$0xff]
        %v227 = vld [vmem:[%s223 + $0x8] sm:$0xff]
        %v228 = vld [vmem:[%s1] sm:$0xff]
        %v229 = vld [vmem:[%s1 + $0x8] sm:$0xff]
        %v230 = vld [vmem:[%s1 + $0x10] sm:$0xff]
        %v231 = vld [vmem:[%s1 + $0x18] sm:$0xff]
        %v232 = vld [vmem:[%s1 + $0x20] sm:$0xff]
        %v233 = vld [vmem:[%s1 + $0x28] sm:$0xff]
        %v234 = vld [vmem:[%s1 + $0x30] sm:$0xff]
        %v235 = vld [vmem:[%s1 + $0x38] sm:$0xff]
        %v236 = vld [vmem:[%s3] sm:$0xff]
        %v237 = vld [vmem:[%s3 + $0x8] sm:$0xff]
        %v238 = vld [vmem:[%s3 + $0x10] sm:$0xff]
        %v239 = vld [vmem:[%s3 + $0x18] sm:$0xff]
        %v240 = vld [vmem:[%s3 + $0x20] sm:$0xff]
        %v241 = vld [vmem:[%s3 + $0x28] sm:$0xff]
        %v242 = vld [vmem:[%s3 + $0x30] sm:$0xff]
        %v243 = vld [vmem:[%s3 + $0x38] sm:$0xff]
        %v244 = vld [vmem:[%s3 + $0x40] sm:$0xff]
        %v245 = vld [vmem:[%s3 + $0x48] sm:$0xff]
        %v246 = vld [vmem:[%s3 + $0x50] sm:$0xff]
        %v247 = vld [vmem:[%s3 + $0x58] sm:$0xff]
        %v248 = vld [vmem:[%s3 + $0x60] sm:$0xff]
        %v249 = vld [vmem:[%s3 + $0x68] sm:$0xff]
        %v250 = vld [vmem:[%s3 + $0x70] sm:$0xff]
        %v251 = vld [vmem:[%s3 + $0x78] sm:$0xff]
        %v252 = vld [vmem:[%s3 + $0x80] sm:$0xff]
        %v253 = vld [vmem:[%s3 + $0x88] sm:$0xff]
        %v254 = vld [vmem:[%s3 + $0x90] sm:$0xff]
        %v255 = vld [vmem:[%s3 + $0x98] sm:$0xff]
        %v256 = vld [vmem:[%s3 + $0xa0] sm:$0xff]
        %v257 = vld [vmem:[%s3 + $0xa8] sm:$0xff]
        %v258 = vld [vmem:[%s3 + $0xb0] sm:$0xff]
        %v259 = vld [vmem:[%s3 + $0xb8] sm:$0xff]
        %v260 = vld [vmem:[%s3 + $0xc0] sm:$0xff]
        %v261 = vld [vmem:[%s3 + $0xc8] sm:$0xff]
        %v262 = vld [vmem:[%s3 + $0xd0] sm:$0xff]
        %v263 = vld [vmem:[%s3 + $0xd8] sm:$0xff]
        %v264 = vld [vmem:[%s3 + $0xe0] sm:$0xff]
        %v265 = vld [vmem:[%s3 + $0xe8] sm:$0xff]
        %v266 = vld [vmem:[%s3 + $0xf0] sm:$0xff]
        %v267 = vld [vmem:[%s3 + $0xf8] sm:$0xff]
        %v268 = vld [vmem:[%s3 + $0x100] sm:$0xff]
        %270 = vset.pattern.permute.xlu0 0
        %271 = vperm.xlu0 %270, %v228
        %v272 = vpop.permute.xlu0 %271
        %275 = vset.pattern.permute.xlu0 0
        %276 = vperm.xlu0 %275, %v229
        %v277 = vpop.permute.xlu0 %276
        %280 = vset.pattern.permute.xlu0 0
        %281 = vperm.xlu0 %280, %v230
        %v282 = vpop.permute.xlu0 %281
        %285 = vset.pattern.permute.xlu0 0
        %286 = vperm.xlu0 %285, %v231
        %v287 = vpop.permute.xlu0 %286
        %290 = vset.pattern.permute.xlu0 0
        %291 = vperm.xlu0 %290, %v232
        %v292 = vpop.permute.xlu0 %291
        %295 = vset.pattern.permute.xlu0 0
        %296 = vperm.xlu0 %295, %v233
        %v297 = vpop.permute.xlu0 %296
        %300 = vset.pattern.permute.xlu0 0
        %301 = vperm.xlu0 %300, %v234
        %v302 = vpop.permute.xlu0 %301
        %305 = vset.pattern.permute.xlu0 0
        %306 = vperm.xlu0 %305, %v235
        %v307 = vpop.permute.xlu0 %306
        %v311 = vlaneseq
        %v312 = vshrl.u32 %v311, 7
        %v313 = vsub.s32 0, %v312
        %v314 = vrot.slane %v226, %v313
        %v315 = vlaneseq
        %v316 = vshrl.u32 %v315, 7
        %v317 = vsub.s32 2, %v316
        %v318 = vrot.slane %v226, %v317
        %v319 = vlaneseq
        %v320 = vshrl.u32 %v319, 7
        %v321 = vsub.s32 4, %v320
        %v322 = vrot.slane %v226, %v321
        %v323 = vlaneseq
        %v324 = vshrl.u32 %v323, 7
        %v325 = vsub.s32 6, %v324
        %v326 = vrot.slane %v226, %v325
        %v327 = vlaneseq
        %v328 = vshrl.u32 %v327, 7
        %v329 = vsub.s32 0, %v328
        %v330 = vrot.slane %v227, %v329
        %v331 = vlaneseq
        %v332 = vshrl.u32 %v331, 7
        %v333 = vsub.s32 2, %v332
        %v334 = vrot.slane %v227, %v333
        %v335 = vlaneseq
        %v336 = vshrl.u32 %v335, 7
        %v337 = vsub.s32 4, %v336
        %v338 = vrot.slane %v227, %v337
        %v339 = vlaneseq
        %v340 = vshrl.u32 %v339, 7
        %v341 = vsub.s32 6, %v340
        %v342 = vrot.slane %v227, %v341
        %v351 = vlaneseq
        %v352 = vshrl.u32 %v351, 7
        %v353 = vsub.s32 0, %v352
        %v354 = vrot.slane %v314, %v353
        %v355 = vlaneseq
        %v356 = vshrl.u32 %v355, 7
        %v357 = vsub.s32 0, %v356
        %v358 = vrot.slane %v318, %v357
        %v359 = vlaneseq
        %v360 = vshrl.u32 %v359, 7
        %v361 = vsub.s32 0, %v360
        %v362 = vrot.slane %v322, %v361
        %v363 = vlaneseq
        %v364 = vshrl.u32 %v363, 7
        %v365 = vsub.s32 0, %v364
        %v366 = vrot.slane %v326, %v365
        %v367 = vlaneseq
        %v368 = vshrl.u32 %v367, 7
        %v369 = vsub.s32 0, %v368
        %v370 = vrot.slane %v330, %v369
        %v371 = vlaneseq
        %v372 = vshrl.u32 %v371, 7
        %v373 = vsub.s32 0, %v372
        %v374 = vrot.slane %v334, %v373
        %v375 = vlaneseq
        %v376 = vshrl.u32 %v375, 7
        %v377 = vsub.s32 0, %v376
        %v378 = vrot.slane %v338, %v377
        %v379 = vlaneseq
        %v380 = vshrl.u32 %v379, 7
        %v381 = vsub.s32 0, %v380
        %v382 = vrot.slane %v342, %v381
        %v383 = vmul.f32 %v272, %v354
        %v384 = vmul.f32 %v272, %v358
        %v385 = vmul.f32 %v272, %v362
        %v386 = vmul.f32 %v272, %v366
        %v387 = vmul.f32 %v272, %v370
        %v388 = vmul.f32 %v272, %v374
        %v389 = vmul.f32 %v272, %v378
        %v390 = vmul.f32 %v272, %v382
        %v391 = vmul.f32 %v277, %v354
        %v392 = vmul.f32 %v277, %v358
        %v393 = vmul.f32 %v277, %v362
        %v394 = vmul.f32 %v277, %v366
        %v395 = vmul.f32 %v277, %v370
        %v396 = vmul.f32 %v277, %v374
        %v397 = vmul.f32 %v277, %v378
        %v398 = vmul.f32 %v277, %v382
        %v399 = vmul.f32 %v282, %v354
        %v400 = vmul.f32 %v282, %v358
        %v401 = vmul.f32 %v282, %v362
        %v402 = vmul.f32 %v282, %v366
        %v403 = vmul.f32 %v282, %v370
        %v404 = vmul.f32 %v282, %v374
        %v405 = vmul.f32 %v282, %v378
        %v406 = vmul.f32 %v282, %v382
        %v407 = vmul.f32 %v287, %v354
        %v408 = vmul.f32 %v287, %v358
        %v409 = vmul.f32 %v287, %v362
        %v410 = vmul.f32 %v287, %v366
        %v411 = vmul.f32 %v287, %v370
        %v412 = vmul.f32 %v287, %v374
        %v413 = vmul.f32 %v287, %v378
        %v414 = vmul.f32 %v287, %v382
        %v415 = vmul.f32 %v292, %v354
        %v416 = vmul.f32 %v292, %v358
        %v417 = vmul.f32 %v292, %v362
        %v418 = vmul.f32 %v292, %v366
        %v419 = vmul.f32 %v292, %v370
        %v420 = vmul.f32 %v292, %v374
        %v421 = vmul.f32 %v292, %v378
        %v422 = vmul.f32 %v292, %v382
        %v423 = vmul.f32 %v297, %v354
        %v424 = vmul.f32 %v297, %v358
        %v425 = vmul.f32 %v297, %v362
        %v426 = vmul.f32 %v297, %v366
        %v427 = vmul.f32 %v297, %v370
        %v428 = vmul.f32 %v297, %v374
        %v429 = vmul.f32 %v297, %v378
        %v430 = vmul.f32 %v297, %v382
        %v431 = vmul.f32 %v302, %v354
        %v432 = vmul.f32 %v302, %v358
        %v433 = vmul.f32 %v302, %v362
        %v434 = vmul.f32 %v302, %v366
        %v435 = vmul.f32 %v302, %v370
        %v436 = vmul.f32 %v302, %v374
        %v437 = vmul.f32 %v302, %v378
        %v438 = vmul.f32 %v302, %v382
        %v439 = vmul.f32 %v307, %v354
        %v440 = vmul.f32 %v307, %v358
        %v441 = vmul.f32 %v307, %v362
        %v442 = vmul.f32 %v307, %v366
        %v443 = vmul.f32 %v307, %v370
        %v444 = vmul.f32 %v307, %v374
        %v445 = vmul.f32 %v307, %v378
        %v446 = vmul.f32 %v307, %v382
        %448 = vset.pattern.permute.xlu0 0
        %449 = vperm.xlu0 %448, %v236
        %v450 = vpop.permute.xlu0 %449
        %453 = vset.pattern.permute.xlu0 0
        %454 = vperm.xlu0 %453, %v237
        %v455 = vpop.permute.xlu0 %454
        %458 = vset.pattern.permute.xlu0 0
        %459 = vperm.xlu0 %458, %v238
        %v460 = vpop.permute.xlu0 %459
        %463 = vset.pattern.permute.xlu0 0
        %464 = vperm.xlu0 %463, %v239
        %v465 = vpop.permute.xlu0 %464
        %468 = vset.pattern.permute.xlu0 0
        %469 = vperm.xlu0 %468, %v240
        %v470 = vpop.permute.xlu0 %469
        %473 = vset.pattern.permute.xlu0 0
        %474 = vperm.xlu0 %473, %v241
        %v475 = vpop.permute.xlu0 %474
        %478 = vset.pattern.permute.xlu0 0
        %479 = vperm.xlu0 %478, %v242
        %v480 = vpop.permute.xlu0 %479
        %483 = vset.pattern.permute.xlu0 0
        %484 = vperm.xlu0 %483, %v243
        %v485 = vpop.permute.xlu0 %484
        %v487 = vadd.f32 %v450, %v383
        %v488 = vadd.f32 %v450, %v384
        %v489 = vadd.f32 %v450, %v385
        %v490 = vadd.f32 %v450, %v386
        %v491 = vadd.f32 %v450, %v387
        %v492 = vadd.f32 %v450, %v388
        %v493 = vadd.f32 %v450, %v389
        %v494 = vadd.f32 %v450, %v390
        %v495 = vadd.f32 %v455, %v391
        %v496 = vadd.f32 %v455, %v392
        %v497 = vadd.f32 %v455, %v393
        %v498 = vadd.f32 %v455, %v394
        %v499 = vadd.f32 %v455, %v395
        %v500 = vadd.f32 %v455, %v396
        %v501 = vadd.f32 %v455, %v397
        %v502 = vadd.f32 %v455, %v398
        %v503 = vadd.f32 %v460, %v399
        %v504 = vadd.f32 %v460, %v400
        %v505 = vadd.f32 %v460, %v401
        %v506 = vadd.f32 %v460, %v402
        %v507 = vadd.f32 %v460, %v403
        %v508 = vadd.f32 %v460, %v404
        %v509 = vadd.f32 %v460, %v405
        %v510 = vadd.f32 %v460, %v406
        %v511 = vadd.f32 %v465, %v407
        %v512 = vadd.f32 %v465, %v408
        %v513 = vadd.f32 %v465, %v409
        %v514 = vadd.f32 %v465, %v410
        %v515 = vadd.f32 %v465, %v411
        %v516 = vadd.f32 %v465, %v412
        %v517 = vadd.f32 %v465, %v413
        %v518 = vadd.f32 %v465, %v414
        %v519 = vadd.f32 %v470, %v415
        %v520 = vadd.f32 %v470, %v416
        %v521 = vadd.f32 %v470, %v417
        %v522 = vadd.f32 %v470, %v418
        %v523 = vadd.f32 %v470, %v419
        %v524 = vadd.f32 %v470, %v420
        %v525 = vadd.f32 %v470, %v421
        %v526 = vadd.f32 %v470, %v422
        %v527 = vadd.f32 %v475, %v423
        %v528 = vadd.f32 %v475, %v424
        %v529 = vadd.f32 %v475, %v425
        %v530 = vadd.f32 %v475, %v426
        %v531 = vadd.f32 %v475, %v427
        %v532 = vadd.f32 %v475, %v428
        %v533 = vadd.f32 %v475, %v429
        %v534 = vadd.f32 %v475, %v430
        %v535 = vadd.f32 %v480, %v431
        %v536 = vadd.f32 %v480, %v432
        %v537 = vadd.f32 %v480, %v433
        %v538 = vadd.f32 %v480, %v434
        %v539 = vadd.f32 %v480, %v435
        %v540 = vadd.f32 %v480, %v436
        %v541 = vadd.f32 %v480, %v437
        %v542 = vadd.f32 %v480, %v438
        %v543 = vadd.f32 %v485, %v439
        %v544 = vadd.f32 %v485, %v440
        %v545 = vadd.f32 %v485, %v441
        %v546 = vadd.f32 %v485, %v442
        %v547 = vadd.f32 %v485, %v443
        %v548 = vadd.f32 %v485, %v444
        %v549 = vadd.f32 %v485, %v445
        %v550 = vadd.f32 %v485, %v446
        %551 = vset.pattern.permute.xlu0 1
        %552 = vperm.xlu0 %551, %v228
        %v553 = vpop.permute.xlu0 %552
        %555 = vset.pattern.permute.xlu0 1
        %556 = vperm.xlu0 %555, %v229
        %v557 = vpop.permute.xlu0 %556
        %559 = vset.pattern.permute.xlu0 1
        %560 = vperm.xlu0 %559, %v230
        %v561 = vpop.permute.xlu0 %560
        %563 = vset.pattern.permute.xlu0 1
        %564 = vperm.xlu0 %563, %v231
        %v565 = vpop.permute.xlu0 %564
        %567 = vset.pattern.permute.xlu0 1
        %568 = vperm.xlu0 %567, %v232
        %v569 = vpop.permute.xlu0 %568
        %571 = vset.pattern.permute.xlu0 1
        %572 = vperm.xlu0 %571, %v233
        %v573 = vpop.permute.xlu0 %572
        %575 = vset.pattern.permute.xlu0 1
        %576 = vperm.xlu0 %575, %v234
        %v577 = vpop.permute.xlu0 %576
        %579 = vset.pattern.permute.xlu0 1
        %580 = vperm.xlu0 %579, %v235
        %v581 = vpop.permute.xlu0 %580
        %v583 = vlaneseq
        %v584 = vshrl.u32 %v583, 7
        %v585 = vsub.s32 1, %v584
        %v586 = vrot.slane %v226, %v585
        %v587 = vlaneseq
        %v588 = vshrl.u32 %v587, 7
        %v589 = vsub.s32 3, %v588
        %v590 = vrot.slane %v226, %v589
        %v591 = vlaneseq
        %v592 = vshrl.u32 %v591, 7
        %v593 = vsub.s32 5, %v592
        %v594 = vrot.slane %v226, %v593
        %v595 = vlaneseq
        %v596 = vshrl.u32 %v595, 7
        %v597 = vsub.s32 7, %v596
        %v598 = vrot.slane %v226, %v597
        %v599 = vlaneseq
        %v600 = vshrl.u32 %v599, 7
        %v601 = vsub.s32 1, %v600
        %v602 = vrot.slane %v227, %v601
        %v603 = vlaneseq
        %v604 = vshrl.u32 %v603, 7
        %v605 = vsub.s32 3, %v604
        %v606 = vrot.slane %v227, %v605
        %v607 = vlaneseq
        %v608 = vshrl.u32 %v607, 7
        %v609 = vsub.s32 5, %v608
        %v610 = vrot.slane %v227, %v609
        %v611 = vlaneseq
        %v612 = vshrl.u32 %v611, 7
        %v613 = vsub.s32 7, %v612
        %v614 = vrot.slane %v227, %v613
        %v623 = vlaneseq
        %v624 = vshrl.u32 %v623, 7
        %v625 = vsub.s32 1, %v624
        %v626 = vrot.slane %v586, %v625
        %v627 = vlaneseq
        %v628 = vshrl.u32 %v627, 7
        %v629 = vsub.s32 1, %v628
        %v630 = vrot.slane %v590, %v629
        %v631 = vlaneseq
        %v632 = vshrl.u32 %v631, 7
        %v633 = vsub.s32 1, %v632
        %v634 = vrot.slane %v594, %v633
        %v635 = vlaneseq
        %v636 = vshrl.u32 %v635, 7
        %v637 = vsub.s32 1, %v636
        %v638 = vrot.slane %v598, %v637
        %v639 = vlaneseq
        %v640 = vshrl.u32 %v639, 7
        %v641 = vsub.s32 1, %v640
        %v642 = vrot.slane %v602, %v641
        %v643 = vlaneseq
        %v644 = vshrl.u32 %v643, 7
        %v645 = vsub.s32 1, %v644
        %v646 = vrot.slane %v606, %v645
        %v647 = vlaneseq
        %v648 = vshrl.u32 %v647, 7
        %v649 = vsub.s32 1, %v648
        %v650 = vrot.slane %v610, %v649
        %v651 = vlaneseq
        %v652 = vshrl.u32 %v651, 7
        %v653 = vsub.s32 1, %v652
        %v654 = vrot.slane %v614, %v653
        %v655 = vmul.f32 %v553, %v626
        %v656 = vmul.f32 %v553, %v630
        %v657 = vmul.f32 %v553, %v634
        %v658 = vmul.f32 %v553, %v638
        %v659 = vmul.f32 %v553, %v642
        %v660 = vmul.f32 %v553, %v646
        %v661 = vmul.f32 %v553, %v650
        %v662 = vmul.f32 %v553, %v654
        %v663 = vmul.f32 %v557, %v626
        %v664 = vmul.f32 %v557, %v630
        %v665 = vmul.f32 %v557, %v634
        %v666 = vmul.f32 %v557, %v638
        %v667 = vmul.f32 %v557, %v642
        %v668 = vmul.f32 %v557, %v646
        %v669 = vmul.f32 %v557, %v650
        %v670 = vmul.f32 %v557, %v654
        %v671 = vmul.f32 %v561, %v626
        %v672 = vmul.f32 %v561, %v630
        %v673 = vmul.f32 %v561, %v634
        %v674 = vmul.f32 %v561, %v638
        %v675 = vmul.f32 %v561, %v642
        %v676 = vmul.f32 %v561, %v646
        %v677 = vmul.f32 %v561, %v650
        %v678 = vmul.f32 %v561, %v654
        %v679 = vmul.f32 %v565, %v626
        %v680 = vmul.f32 %v565, %v630
        %v681 = vmul.f32 %v565, %v634
        %v682 = vmul.f32 %v565, %v638
        %v683 = vmul.f32 %v565, %v642
        %v684 = vmul.f32 %v565, %v646
        %v685 = vmul.f32 %v565, %v650
        %v686 = vmul.f32 %v565, %v654
        %v687 = vmul.f32 %v569, %v626
        %v688 = vmul.f32 %v569, %v630
        %v689 = vmul.f32 %v569, %v634
        %v690 = vmul.f32 %v569, %v638
        %v691 = vmul.f32 %v569, %v642
        %v692 = vmul.f32 %v569, %v646
        %v693 = vmul.f32 %v569, %v650
        %v694 = vmul.f32 %v569, %v654
        %v695 = vmul.f32 %v573, %v626
        %v696 = vmul.f32 %v573, %v630
        %v697 = vmul.f32 %v573, %v634
        %v698 = vmul.f32 %v573, %v638
        %v699 = vmul.f32 %v573, %v642
        %v700 = vmul.f32 %v573, %v646
        %v701 = vmul.f32 %v573, %v650
        %v702 = vmul.f32 %v573, %v654
        %v703 = vmul.f32 %v577, %v626
        %v704 = vmul.f32 %v577, %v630
        %v705 = vmul.f32 %v577, %v634
        %v706 = vmul.f32 %v577, %v638
        %v707 = vmul.f32 %v577, %v642
        %v708 = vmul.f32 %v577, %v646
        %v709 = vmul.f32 %v577, %v650
        %v710 = vmul.f32 %v577, %v654
        %v711 = vmul.f32 %v581, %v626
        %v712 = vmul.f32 %v581, %v630
        %v713 = vmul.f32 %v581, %v634
        %v714 = vmul.f32 %v581, %v638
        %v715 = vmul.f32 %v581, %v642
        %v716 = vmul.f32 %v581, %v646
        %v717 = vmul.f32 %v581, %v650
        %v718 = vmul.f32 %v581, %v654
        %v719 = vadd.f32 %v487, %v655
        %v720 = vadd.f32 %v488, %v656
        %v721 = vadd.f32 %v489, %v657
        %v722 = vadd.f32 %v490, %v658
        %v723 = vadd.f32 %v491, %v659
        %v724 = vadd.f32 %v492, %v660
        %v725 = vadd.f32 %v493, %v661
        %v726 = vadd.f32 %v494, %v662
        %v727 = vadd.f32 %v495, %v663
        %v728 = vadd.f32 %v496, %v664
        %v729 = vadd.f32 %v497, %v665
        %v730 = vadd.f32 %v498, %v666
        %v731 = vadd.f32 %v499, %v667
        %v732 = vadd.f32 %v500, %v668
        %v733 = vadd.f32 %v501, %v669
        %v734 = vadd.f32 %v502, %v670
        %v735 = vadd.f32 %v503, %v671
        %v736 = vadd.f32 %v504, %v672
        %v737 = vadd.f32 %v505, %v673
        %v738 = vadd.f32 %v506, %v674
        %v739 = vadd.f32 %v507, %v675
        %v740 = vadd.f32 %v508, %v676
        %v741 = vadd.f32 %v509, %v677
        %v742 = vadd.f32 %v510, %v678
        %v743 = vadd.f32 %v511, %v679
        %v744 = vadd.f32 %v512, %v680
        %v745 = vadd.f32 %v513, %v681
        %v746 = vadd.f32 %v514, %v682
        %v747 = vadd.f32 %v515, %v683
        %v748 = vadd.f32 %v516, %v684
        %v749 = vadd.f32 %v517, %v685
        %v750 = vadd.f32 %v518, %v686
        %v751 = vadd.f32 %v519, %v687
        %v752 = vadd.f32 %v520, %v688
        %v753 = vadd.f32 %v521, %v689
        %v754 = vadd.f32 %v522, %v690
        %v755 = vadd.f32 %v523, %v691
        %v756 = vadd.f32 %v524, %v692
        %v757 = vadd.f32 %v525, %v693
        %v758 = vadd.f32 %v526, %v694
        %v759 = vadd.f32 %v527, %v695
        %v760 = vadd.f32 %v528, %v696
        %v761 = vadd.f32 %v529, %v697
        %v762 = vadd.f32 %v530, %v698
        %v763 = vadd.f32 %v531, %v699
        %v764 = vadd.f32 %v532, %v700
        %v765 = vadd.f32 %v533, %v701
        %v766 = vadd.f32 %v534, %v702
        %v767 = vadd.f32 %v535, %v703
        %v768 = vadd.f32 %v536, %v704
        %v769 = vadd.f32 %v537, %v705
        %v770 = vadd.f32 %v538, %v706
        %v771 = vadd.f32 %v539, %v707
        %v772 = vadd.f32 %v540, %v708
        %v773 = vadd.f32 %v541, %v709
        %v774 = vadd.f32 %v542, %v710
        %v775 = vadd.f32 %v543, %v711
        %v776 = vadd.f32 %v544, %v712
        %v777 = vadd.f32 %v545, %v713
        %v778 = vadd.f32 %v546, %v714
        %v779 = vadd.f32 %v547, %v715
        %v780 = vadd.f32 %v548, %v716
        %v781 = vadd.f32 %v549, %v717
        %v782 = vadd.f32 %v550, %v718
        %v783 = vtanh.pop %v719
        %v784 = vtanh.pop %v720
        %v785 = vtanh.pop %v721
        %v786 = vtanh.pop %v722
        %v787 = vtanh.pop %v723
        %v788 = vtanh.pop %v724
        %v789 = vtanh.pop %v725
        %v790 = vtanh.pop %v726
        %v791 = vtanh.pop %v727
        %v792 = vtanh.pop %v728
        %v793 = vtanh.pop %v729
        %v794 = vtanh.pop %v730
        %v795 = vtanh.pop %v731
        %v796 = vtanh.pop %v732
        %v797 = vtanh.pop %v733
        %v798 = vtanh.pop %v734
        %v799 = vtanh.pop %v735
        %v800 = vtanh.pop %v736
        %v801 = vtanh.pop %v737
        %v802 = vtanh.pop %v738
        %v803 = vtanh.pop %v739
        %v804 = vtanh.pop %v740
        %v805 = vtanh.pop %v741
        %v806 = vtanh.pop %v742
        %v807 = vtanh.pop %v743
        %v808 = vtanh.pop %v744
        %v809 = vtanh.pop %v745
        %v810 = vtanh.pop %v746
        %v811 = vtanh.pop %v747
        %v812 = vtanh.pop %v748
        %v813 = vtanh.pop %v749
        %v814 = vtanh.pop %v750
        %v815 = vtanh.pop %v751
        %v816 = vtanh.pop %v752
        %v817 = vtanh.pop %v753
        %v818 = vtanh.pop %v754
        %v819 = vtanh.pop %v755
        %v820 = vtanh.pop %v756
        %v821 = vtanh.pop %v757
        %v822 = vtanh.pop %v758
        %v823 = vtanh.pop %v759
        %v824 = vtanh.pop %v760
        %v825 = vtanh.pop %v761
        %v826 = vtanh.pop %v762
        %v827 = vtanh.pop %v763
        %v828 = vtanh.pop %v764
        %v829 = vtanh.pop %v765
        %v830 = vtanh.pop %v766
        %v831 = vtanh.pop %v767
        %v832 = vtanh.pop %v768
        %v833 = vtanh.pop %v769
        %v834 = vtanh.pop %v770
        %v835 = vtanh.pop %v771
        %v836 = vtanh.pop %v772
        %v837 = vtanh.pop %v773
        %v838 = vtanh.pop %v774
        %v839 = vtanh.pop %v775
        %v840 = vtanh.pop %v776
        %v841 = vtanh.pop %v777
        %v842 = vtanh.pop %v778
        %v843 = vtanh.pop %v779
        %v844 = vtanh.pop %v780
        %v845 = vtanh.pop %v781
        %v846 = vtanh.pop %v782
        %v847 = vld [vmem:[%s2] sm:$0xff]
        %v848 = vld [vmem:[%s2 + $0x8] sm:$0xff]
        %v849 = vld [vmem:[%s2 + $0x10] sm:$0xff]
        %v850 = vld [vmem:[%s2 + $0x18] sm:$0xff]
        %v851 = vld [vmem:[%s2 + $0x20] sm:$0xff]
        %v852 = vld [vmem:[%s2 + $0x28] sm:$0xff]
        %v853 = vld [vmem:[%s2 + $0x30] sm:$0xff]
        %v854 = vld [vmem:[%s2 + $0x38] sm:$0xff]
        %856 = vset.pattern.permute.xlu0 0
        %857 = vperm.xlu0 %856, %v244
        %v858 = vpop.permute.xlu0 %857
        %861 = vset.pattern.permute.xlu0 0
        %862 = vperm.xlu0 %861, %v245
        %v863 = vpop.permute.xlu0 %862
        %866 = vset.pattern.permute.xlu0 0
        %867 = vperm.xlu0 %866, %v246
        %v868 = vpop.permute.xlu0 %867
        %871 = vset.pattern.permute.xlu0 0
        %872 = vperm.xlu0 %871, %v247
        %v873 = vpop.permute.xlu0 %872
        %876 = vset.pattern.permute.xlu0 0
        %877 = vperm.xlu0 %876, %v248
        %v878 = vpop.permute.xlu0 %877
        %881 = vset.pattern.permute.xlu0 0
        %882 = vperm.xlu0 %881, %v249
        %v883 = vpop.permute.xlu0 %882
        %886 = vset.pattern.permute.xlu0 0
        %887 = vperm.xlu0 %886, %v250
        %v888 = vpop.permute.xlu0 %887
        %891 = vset.pattern.permute.xlu0 0
        %892 = vperm.xlu0 %891, %v251
        %v893 = vpop.permute.xlu0 %892
        %vm895 = vcmask 523264
        %v897 = vsel %vm895, %v847, 0
        %v900 = vsel %vm895, %v848, 0
        %v903 = vsel %vm895, %v849, 0
        %v906 = vsel %vm895, %v850, 0
        %v909 = vsel %vm895, %v851, 0
        %v912 = vsel %vm895, %v852, 0
        %v915 = vsel %vm895, %v853, 0
        %v918 = vsel %vm895, %v854, 0
        %920 = vmatprep.subr.mxu0 0.0
        %921 = vmatpush1.msra.mxu0 0.0
        %922 = vmatprep.subr.mxu0 0.0
        %923 = vmatpush1.msra.mxu0 0.0
        %924 = vmatprep.subr.mxu0 0.0
        %925 = vmatpush1.msra.mxu0 0.0
        %926 = vmatprep.subr.mxu0 0.0
        %927 = vmatpush1.msra.mxu0 0.0
        %928 = vmatprep.subr.mxu0 0.0
        %929 = vmatpush1.msra.mxu0 0.0
        %930 = vmatprep.subr.mxu0 0.0
        %931 = vmatpush1.msra.mxu0 0.0
        %932 = vmatprep.subr.mxu0 0.0
        %933 = vmatpush1.msra.mxu0 0.0
        %934 = vmatprep.subr.mxu0 0.0
        %935 = vmatpush1.msra.mxu0 0.0
        %936 = vmatprep.subr.mxu0 %v840
        %937 = vmatpush1.msra.mxu0 %v839
        %938 = vmatprep.subr.mxu0 %v832
        %939 = vmatpush1.msra.mxu0 %v831
        %940 = vmatprep.subr.mxu0 %v824
        %941 = vmatpush1.msra.mxu0 %v823
        %942 = vmatprep.subr.mxu0 %v816
        %943 = vmatpush1.msra.mxu0 %v815
        %944 = vmatprep.subr.mxu0 %v808
        %945 = vmatpush1.msra.mxu0 %v807
        %946 = vmatprep.subr.mxu0 %v800
        %947 = vmatpush1.msra.mxu0 %v799
        %948 = vmatprep.subr.mxu0 %v792
        %949 = vmatpush1.msra.mxu0 %v791
        %950 = vmatprep.subr.mxu0 %v784
        %951 = vmatpush1.msra.mxu0 %v783
        %952 = vmatprep.subr.mxu0 0.0
        %953 = vmatpush2.msra.mxu0 0.0
        %954 = vmatprep.subr.mxu0 0.0
        %955 = vmatpush2.msra.mxu0 0.0
        %956 = vmatprep.subr.mxu0 0.0
        %957 = vmatpush2.msra.mxu0 0.0
        %958 = vmatprep.subr.mxu0 0.0
        %959 = vmatpush2.msra.mxu0 0.0
        %960 = vmatprep.subr.mxu0 0.0
        %961 = vmatpush2.msra.mxu0 0.0
        %962 = vmatprep.subr.mxu0 0.0
        %963 = vmatpush2.msra.mxu0 0.0
        %964 = vmatprep.subr.mxu0 0.0
        %965 = vmatpush2.msra.mxu0 0.0
        %966 = vmatprep.subr.mxu0 0.0
        %967 = vmatpush2.msra.mxu0 0.0
        %968 = vmatprep.subr.mxu0 0.0
        %969 = vmatpush2.msra.mxu0 0.0
        %970 = vmatprep.subr.mxu0 0.0
        %971 = vmatpush2.msra.mxu0 0.0
        %972 = vmatprep.subr.mxu0 0.0
        %973 = vmatpush2.msra.mxu0 0.0
        %974 = vmatprep.subr.mxu0 0.0
        %975 = vmatpush2.msra.mxu0 0.0
        %976 = vmatprep.subr.mxu0 0.0
        %977 = vmatpush2.msra.mxu0 0.0
        %978 = vmatprep.subr.mxu0 0.0
        %979 = vmatpush2.msra.mxu0 0.0
        %980 = vmatprep.subr.mxu0 0.0
        %981 = vmatpush2.msra.mxu0 0.0
        %982 = vmatprep.subr.mxu0 0.0
        %983 = vmatpush2.msra.mxu0 0.0
        %984 = vmatprep.mubr.f32.mxu0 0.0
        %985 = vmatmul.mubr.f32.gmra.mxu0 %v897
        %v986 = vpop.f32.mrf.mxu0
        %v987 = vadd.f32 %v858, %v986
        %v988 = vpop.f32.mrf.mxu0
        %v989 = vadd.f32 %v858, %v988
        %990 = vmatprep.mubr.f32.mxu0 0.0
        %991 = vmatmul.mubr.f32.gmra.mxu0 %v900
        %v992 = vpop.f32.mrf.mxu0
        %v993 = vadd.f32 %v863, %v992
        %v994 = vpop.f32.mrf.mxu0
        %v995 = vadd.f32 %v863, %v994
        %996 = vmatprep.mubr.f32.mxu0 0.0
        %997 = vmatmul.mubr.f32.gmra.mxu0 %v903
        %v998 = vpop.f32.mrf.mxu0
        %v999 = vadd.f32 %v868, %v998
        %v1000 = vpop.f32.mrf.mxu0
        %v1001 = vadd.f32 %v868, %v1000
        %1002 = vmatprep.mubr.f32.mxu0 0.0
        %1003 = vmatmul.mubr.f32.gmra.mxu0 %v906
        %v1004 = vpop.f32.mrf.mxu0
        %v1005 = vadd.f32 %v873, %v1004
        %v1006 = vpop.f32.mrf.mxu0
        %v1007 = vadd.f32 %v873, %v1006
        %1008 = vmatprep.mubr.f32.mxu0 0.0
        %1009 = vmatmul.mubr.f32.gmra.mxu0 %v909
        %v1010 = vpop.f32.mrf.mxu0
        %v1011 = vadd.f32 %v878, %v1010
        %v1012 = vpop.f32.mrf.mxu0
        %v1013 = vadd.f32 %v878, %v1012
        %1014 = vmatprep.mubr.f32.mxu0 0.0
        %1015 = vmatmul.mubr.f32.gmra.mxu0 %v912
        %v1016 = vpop.f32.mrf.mxu0
        %v1017 = vadd.f32 %v883, %v1016
        %v1018 = vpop.f32.mrf.mxu0
        %v1019 = vadd.f32 %v883, %v1018
        %1020 = vmatprep.mubr.f32.mxu0 0.0
        %1021 = vmatmul.mubr.f32.gmra.mxu0 %v915
        %v1022 = vpop.f32.mrf.mxu0
        %v1023 = vadd.f32 %v888, %v1022
        %v1024 = vpop.f32.mrf.mxu0
        %v1025 = vadd.f32 %v888, %v1024
        %1026 = vmatprep.mubr.f32.mxu0 0.0
        %1027 = vmatmul.mubr.f32.gmra.mxu0 %v918
        %v1028 = vpop.f32.mrf.mxu0
        %v1029 = vadd.f32 %v893, %v1028
        %v1030 = vpop.f32.mrf.mxu0
        %v1031 = vadd.f32 %v893, %v1030
        %1032 = vdwg.mxu0
        %1033 = vmatprep.subr.mxu0 0.0
        %1034 = vmatpush1.msra.mxu0 0.0
        %1035 = vmatprep.subr.mxu0 0.0
        %1036 = vmatpush1.msra.mxu0 0.0
        %1037 = vmatprep.subr.mxu0 0.0
        %1038 = vmatpush1.msra.mxu0 0.0
        %1039 = vmatprep.subr.mxu0 0.0
        %1040 = vmatpush1.msra.mxu0 0.0
        %1041 = vmatprep.subr.mxu0 0.0
        %1042 = vmatpush1.msra.mxu0 0.0
        %1043 = vmatprep.subr.mxu0 0.0
        %1044 = vmatpush1.msra.mxu0 0.0
        %1045 = vmatprep.subr.mxu0 0.0
        %1046 = vmatpush1.msra.mxu0 0.0
        %1047 = vmatprep.subr.mxu0 0.0
        %1048 = vmatpush1.msra.mxu0 0.0
        %1049 = vmatprep.subr.mxu0 %v842
        %1050 = vmatpush1.msra.mxu0 %v841
        %1051 = vmatprep.subr.mxu0 %v834
        %1052 = vmatpush1.msra.mxu0 %v833
        %1053 = vmatprep.subr.mxu0 %v826
        %1054 = vmatpush1.msra.mxu0 %v825
        %1055 = vmatprep.subr.mxu0 %v818
        %1056 = vmatpush1.msra.mxu0 %v817
        %1057 = vmatprep.subr.mxu0 %v810
        %1058 = vmatpush1.msra.mxu0 %v809
        %1059 = vmatprep.subr.mxu0 %v802
        %1060 = vmatpush1.msra.mxu0 %v801
        %1061 = vmatprep.subr.mxu0 %v794
        %1062 = vmatpush1.msra.mxu0 %v793
        %1063 = vmatprep.subr.mxu0 %v786
        %1064 = vmatpush1.msra.mxu0 %v785
        %1065 = vmatprep.subr.mxu0 0.0
        %1066 = vmatpush2.msra.mxu0 0.0
        %1067 = vmatprep.subr.mxu0 0.0
        %1068 = vmatpush2.msra.mxu0 0.0
        %1069 = vmatprep.subr.mxu0 0.0
        %1070 = vmatpush2.msra.mxu0 0.0
        %1071 = vmatprep.subr.mxu0 0.0
        %1072 = vmatpush2.msra.mxu0 0.0
        %1073 = vmatprep.subr.mxu0 0.0
        %1074 = vmatpush2.msra.mxu0 0.0
        %1075 = vmatprep.subr.mxu0 0.0
        %1076 = vmatpush2.msra.mxu0 0.0
        %1077 = vmatprep.subr.mxu0 0.0
        %1078 = vmatpush2.msra.mxu0 0.0
        %1079 = vmatprep.subr.mxu0 0.0
        %1080 = vmatpush2.msra.mxu0 0.0
        %1081 = vmatprep.subr.mxu0 0.0
        %1082 = vmatpush2.msra.mxu0 0.0
        %1083 = vmatprep.subr.mxu0 0.0
        %1084 = vmatpush2.msra.mxu0 0.0
        %1085 = vmatprep.subr.mxu0 0.0
        %1086 = vmatpush2.msra.mxu0 0.0
        %1087 = vmatprep.subr.mxu0 0.0
        %1088 = vmatpush2.msra.mxu0 0.0
        %1089 = vmatprep.subr.mxu0 0.0
        %1090 = vmatpush2.msra.mxu0 0.0
        %1091 = vmatprep.subr.mxu0 0.0
        %1092 = vmatpush2.msra.mxu0 0.0
        %1093 = vmatprep.subr.mxu0 0.0
        %1094 = vmatpush2.msra.mxu0 0.0
        %1095 = vmatprep.subr.mxu0 0.0
        %1096 = vmatpush2.msra.mxu0 0.0
        %1097 = vmatprep.mubr.f32.mxu0 0.0
        %1098 = vmatmul.mubr.f32.gmra.mxu0 %v897
        %v1099 = vpop.f32.mrf.mxu0
        %v1100 = vadd.f32 %v858, %v1099
        %v1101 = vpop.f32.mrf.mxu0
        %v1102 = vadd.f32 %v858, %v1101
        %1103 = vmatprep.mubr.f32.mxu0 0.0
        %1104 = vmatmul.mubr.f32.gmra.mxu0 %v900
        %v1105 = vpop.f32.mrf.mxu0
        %v1106 = vadd.f32 %v863, %v1105
        %v1107 = vpop.f32.mrf.mxu0
        %v1108 = vadd.f32 %v863, %v1107
        %1109 = vmatprep.mubr.f32.mxu0 0.0
        %1110 = vmatmul.mubr.f32.gmra.mxu0 %v903
        %v1111 = vpop.f32.mrf.mxu0
        %v1112 = vadd.f32 %v868, %v1111
        %v1113 = vpop.f32.mrf.mxu0
        %v1114 = vadd.f32 %v868, %v1113
        %1115 = vmatprep.mubr.f32.mxu0 0.0
        %1116 = vmatmul.mubr.f32.gmra.mxu0 %v906
        %v1117 = vpop.f32.mrf.mxu0
        %v1118 = vadd.f32 %v873, %v1117
        %v1119 = vpop.f32.mrf.mxu0
        %v1120 = vadd.f32 %v873, %v1119
        %1121 = vmatprep.mubr.f32.mxu0 0.0
        %1122 = vmatmul.mubr.f32.gmra.mxu0 %v909
        %v1123 = vpop.f32.mrf.mxu0
        %v1124 = vadd.f32 %v878, %v1123
        %v1125 = vpop.f32.mrf.mxu0
        %v1126 = vadd.f32 %v878, %v1125
        %1127 = vmatprep.mubr.f32.mxu0 0.0
        %1128 = vmatmul.mubr.f32.gmra.mxu0 %v912
        %v1129 = vpop.f32.mrf.mxu0
        %v1130 = vadd.f32 %v883, %v1129
        %v1131 = vpop.f32.mrf.mxu0
        %v1132 = vadd.f32 %v883, %v1131
        %1133 = vmatprep.mubr.f32.mxu0 0.0
        %1134 = vmatmul.mubr.f32.gmra.mxu0 %v915
        %v1135 = vpop.f32.mrf.mxu0
        %v1136 = vadd.f32 %v888, %v1135
        %v1137 = vpop.f32.mrf.mxu0
        %v1138 = vadd.f32 %v888, %v1137
        %1139 = vmatprep.mubr.f32.mxu0 0.0
        %1140 = vmatmul.mubr.f32.gmra.mxu0 %v918
        %v1141 = vpop.f32.mrf.mxu0
        %v1142 = vadd.f32 %v893, %v1141
        %v1143 = vpop.f32.mrf.mxu0
        %v1144 = vadd.f32 %v893, %v1143
        %1145 = vdwg.mxu0
        %1146 = vmatprep.subr.mxu0 0.0
        %1147 = vmatpush1.msra.mxu0 0.0
        %1148 = vmatprep.subr.mxu0 0.0
        %1149 = vmatpush1.msra.mxu0 0.0
        %1150 = vmatprep.subr.mxu0 0.0
        %1151 = vmatpush1.msra.mxu0 0.0
        %1152 = vmatprep.subr.mxu0 0.0
        %1153 = vmatpush1.msra.mxu0 0.0
        %1154 = vmatprep.subr.mxu0 0.0
        %1155 = vmatpush1.msra.mxu0 0.0
        %1156 = vmatprep.subr.mxu0 0.0
        %1157 = vmatpush1.msra.mxu0 0.0
        %1158 = vmatprep.subr.mxu0 0.0
        %1159 = vmatpush1.msra.mxu0 0.0
        %1160 = vmatprep.subr.mxu0 0.0
        %1161 = vmatpush1.msra.mxu0 0.0
        %1162 = vmatprep.subr.mxu0 %v844
        %1163 = vmatpush1.msra.mxu0 %v843
        %1164 = vmatprep.subr.mxu0 %v836
        %1165 = vmatpush1.msra.mxu0 %v835
        %1166 = vmatprep.subr.mxu0 %v828
        %1167 = vmatpush1.msra.mxu0 %v827
        %1168 = vmatprep.subr.mxu0 %v820
        %1169 = vmatpush1.msra.mxu0 %v819
        %1170 = vmatprep.subr.mxu0 %v812
        %1171 = vmatpush1.msra.mxu0 %v811
        %1172 = vmatprep.subr.mxu0 %v804
        %1173 = vmatpush1.msra.mxu0 %v803
        %1174 = vmatprep.subr.mxu0 %v796
        %1175 = vmatpush1.msra.mxu0 %v795
        %1176 = vmatprep.subr.mxu0 %v788
        %1177 = vmatpush1.msra.mxu0 %v787
        %1178 = vmatprep.subr.mxu0 0.0
        %1179 = vmatpush2.msra.mxu0 0.0
        %1180 = vmatprep.subr.mxu0 0.0
        %1181 = vmatpush2.msra.mxu0 0.0
        %1182 = vmatprep.subr.mxu0 0.0
        %1183 = vmatpush2.msra.mxu0 0.0
        %1184 = vmatprep.subr.mxu0 0.0
        %1185 = vmatpush2.msra.mxu0 0.0
        %1186 = vmatprep.subr.mxu0 0.0
        %1187 = vmatpush2.msra.mxu0 0.0
        %1188 = vmatprep.subr.mxu0 0.0
        %1189 = vmatpush2.msra.mxu0 0.0
        %1190 = vmatprep.subr.mxu0 0.0
        %1191 = vmatpush2.msra.mxu0 0.0
        %1192 = vmatprep.subr.mxu0 0.0
        %1193 = vmatpush2.msra.mxu0 0.0
        %1194 = vmatprep.subr.mxu0 0.0
        %1195 = vmatpush2.msra.mxu0 0.0
        %1196 = vmatprep.subr.mxu0 0.0
        %1197 = vmatpush2.msra.mxu0 0.0
        %1198 = vmatprep.subr.mxu0 0.0
        %1199 = vmatpush2.msra.mxu0 0.0
        %1200 = vmatprep.subr.mxu0 0.0
        %1201 = vmatpush2.msra.mxu0 0.0
        %1202 = vmatprep.subr.mxu0 0.0
        %1203 = vmatpush2.msra.mxu0 0.0
        %1204 = vmatprep.subr.mxu0 0.0
        %1205 = vmatpush2.msra.mxu0 0.0
        %1206 = vmatprep.subr.mxu0 0.0
        %1207 = vmatpush2.msra.mxu0 0.0
        %1208 = vmatprep.subr.mxu0 0.0
        %1209 = vmatpush2.msra.mxu0 0.0
        %1210 = vmatprep.mubr.f32.mxu0 0.0
        %1211 = vmatmul.mubr.f32.gmra.mxu0 %v897
        %v1212 = vpop.f32.mrf.mxu0
        %v1213 = vadd.f32 %v858, %v1212
        %v1214 = vpop.f32.mrf.mxu0
        %v1215 = vadd.f32 %v858, %v1214
        %1216 = vmatprep.mubr.f32.mxu0 0.0
        %1217 = vmatmul.mubr.f32.gmra.mxu0 %v900
        %v1218 = vpop.f32.mrf.mxu0
        %v1219 = vadd.f32 %v863, %v1218
        %v1220 = vpop.f32.mrf.mxu0
        %v1221 = vadd.f32 %v863, %v1220
        %1222 = vmatprep.mubr.f32.mxu0 0.0
        %1223 = vmatmul.mubr.f32.gmra.mxu0 %v903
        %v1224 = vpop.f32.mrf.mxu0
        %v1225 = vadd.f32 %v868, %v1224
        %v1226 = vpop.f32.mrf.mxu0
        %v1227 = vadd.f32 %v868, %v1226
        %1228 = vmatprep.mubr.f32.mxu0 0.0
        %1229 = vmatmul.mubr.f32.gmra.mxu0 %v906
        %v1230 = vpop.f32.mrf.mxu0
        %v1231 = vadd.f32 %v873, %v1230
        %v1232 = vpop.f32.mrf.mxu0
        %v1233 = vadd.f32 %v873, %v1232
        %1234 = vmatprep.mubr.f32.mxu0 0.0
        %1235 = vmatmul.mubr.f32.gmra.mxu0 %v909
        %v1236 = vpop.f32.mrf.mxu0
        %v1237 = vadd.f32 %v878, %v1236
        %v1238 = vpop.f32.mrf.mxu0
        %v1239 = vadd.f32 %v878, %v1238
        %1240 = vmatprep.mubr.f32.mxu0 0.0
        %1241 = vmatmul.mubr.f32.gmra.mxu0 %v912
        %v1242 = vpop.f32.mrf.mxu0
        %v1243 = vadd.f32 %v883, %v1242
        %v1244 = vpop.f32.mrf.mxu0
        %v1245 = vadd.f32 %v883, %v1244
        %1246 = vmatprep.mubr.f32.mxu0 0.0
        %1247 = vmatmul.mubr.f32.gmra.mxu0 %v915
        %v1248 = vpop.f32.mrf.mxu0
        %v1249 = vadd.f32 %v888, %v1248
        %v1250 = vpop.f32.mrf.mxu0
        %v1251 = vadd.f32 %v888, %v1250
        %1252 = vmatprep.mubr.f32.mxu0 0.0
        %1253 = vmatmul.mubr.f32.gmra.mxu0 %v918
        %v1254 = vpop.f32.mrf.mxu0
        %v1255 = vadd.f32 %v893, %v1254
        %v1256 = vpop.f32.mrf.mxu0
        %v1257 = vadd.f32 %v893, %v1256
        %1258 = vdwg.mxu0
        %1259 = vmatprep.subr.mxu0 0.0
        %1260 = vmatpush1.msra.mxu0 0.0
        %1261 = vmatprep.subr.mxu0 0.0
        %1262 = vmatpush1.msra.mxu0 0.0
        %1263 = vmatprep.subr.mxu0 0.0
        %1264 = vmatpush1.msra.mxu0 0.0
        %1265 = vmatprep.subr.mxu0 0.0
        %1266 = vmatpush1.msra.mxu0 0.0
        %1267 = vmatprep.subr.mxu0 0.0
        %1268 = vmatpush1.msra.mxu0 0.0
        %1269 = vmatprep.subr.mxu0 0.0
        %1270 = vmatpush1.msra.mxu0 0.0
        %1271 = vmatprep.subr.mxu0 0.0
        %1272 = vmatpush1.msra.mxu0 0.0
        %1273 = vmatprep.subr.mxu0 0.0
        %1274 = vmatpush1.msra.mxu0 0.0
        %1275 = vmatprep.subr.mxu0 %v846
        %1276 = vmatpush1.msra.mxu0 %v845
        %1277 = vmatprep.subr.mxu0 %v838
        %1278 = vmatpush1.msra.mxu0 %v837
        %1279 = vmatprep.subr.mxu0 %v830
        %1280 = vmatpush1.msra.mxu0 %v829
        %1281 = vmatprep.subr.mxu0 %v822
        %1282 = vmatpush1.msra.mxu0 %v821
        %1283 = vmatprep.subr.mxu0 %v814
        %1284 = vmatpush1.msra.mxu0 %v813
        %1285 = vmatprep.subr.mxu0 %v806
        %1286 = vmatpush1.msra.mxu0 %v805
        %1287 = vmatprep.subr.mxu0 %v798
        %1288 = vmatpush1.msra.mxu0 %v797
        %1289 = vmatprep.subr.mxu0 %v790
        %1290 = vmatpush1.msra.mxu0 %v789
        %1291 = vmatprep.subr.mxu0 0.0
        %1292 = vmatpush2.msra.mxu0 0.0
        %1293 = vmatprep.subr.mxu0 0.0
        %1294 = vmatpush2.msra.mxu0 0.0
        %1295 = vmatprep.subr.mxu0 0.0
        %1296 = vmatpush2.msra.mxu0 0.0
        %1297 = vmatprep.subr.mxu0 0.0
        %1298 = vmatpush2.msra.mxu0 0.0
        %1299 = vmatprep.subr.mxu0 0.0
        %1300 = vmatpush2.msra.mxu0 0.0
        %1301 = vmatprep.subr.mxu0 0.0
        %1302 = vmatpush2.msra.mxu0 0.0
        %1303 = vmatprep.subr.mxu0 0.0
        %1304 = vmatpush2.msra.mxu0 0.0
        %1305 = vmatprep.subr.mxu0 0.0
        %1306 = vmatpush2.msra.mxu0 0.0
        %1307 = vmatprep.subr.mxu0 0.0
        %1308 = vmatpush2.msra.mxu0 0.0
        %1309 = vmatprep.subr.mxu0 0.0
        %1310 = vmatpush2.msra.mxu0 0.0
        %1311 = vmatprep.subr.mxu0 0.0
        %1312 = vmatpush2.msra.mxu0 0.0
        %1313 = vmatprep.subr.mxu0 0.0
        %1314 = vmatpush2.msra.mxu0 0.0
        %1315 = vmatprep.subr.mxu0 0.0
        %1316 = vmatpush2.msra.mxu0 0.0
        %1317 = vmatprep.subr.mxu0 0.0
        %1318 = vmatpush2.msra.mxu0 0.0
        %1319 = vmatprep.subr.mxu0 0.0
        %1320 = vmatpush2.msra.mxu0 0.0
        %1321 = vmatprep.subr.mxu0 0.0
        %1322 = vmatpush2.msra.mxu0 0.0
        %1323 = vmatprep.mubr.f32.mxu0 0.0
        %1324 = vmatmul.mubr.f32.gmra.mxu0 %v897
        %v1325 = vpop.f32.mrf.mxu0
        %v1326 = vadd.f32 %v858, %v1325
        %v1327 = vpop.f32.mrf.mxu0
        %v1328 = vadd.f32 %v858, %v1327
        %1329 = vmatprep.mubr.f32.mxu0 0.0
        %1330 = vmatmul.mubr.f32.gmra.mxu0 %v900
        %v1331 = vpop.f32.mrf.mxu0
        %v1332 = vadd.f32 %v863, %v1331
        %v1333 = vpop.f32.mrf.mxu0
        %v1334 = vadd.f32 %v863, %v1333
        %1335 = vmatprep.mubr.f32.mxu0 0.0
        %1336 = vmatmul.mubr.f32.gmra.mxu0 %v903
        %v1337 = vpop.f32.mrf.mxu0
        %v1338 = vadd.f32 %v868, %v1337
        %v1339 = vpop.f32.mrf.mxu0
        %v1340 = vadd.f32 %v868, %v1339
        %1341 = vmatprep.mubr.f32.mxu0 0.0
        %1342 = vmatmul.mubr.f32.gmra.mxu0 %v906
        %v1343 = vpop.f32.mrf.mxu0
        %v1344 = vadd.f32 %v873, %v1343
        %v1345 = vpop.f32.mrf.mxu0
        %v1346 = vadd.f32 %v873, %v1345
        %1347 = vmatprep.mubr.f32.mxu0 0.0
        %1348 = vmatmul.mubr.f32.gmra.mxu0 %v909
        %v1349 = vpop.f32.mrf.mxu0
        %v1350 = vadd.f32 %v878, %v1349
        %v1351 = vpop.f32.mrf.mxu0
        %v1352 = vadd.f32 %v878, %v1351
        %1353 = vmatprep.mubr.f32.mxu0 0.0
        %1354 = vmatmul.mubr.f32.gmra.mxu0 %v912
        %v1355 = vpop.f32.mrf.mxu0
        %v1356 = vadd.f32 %v883, %v1355
        %v1357 = vpop.f32.mrf.mxu0
        %v1358 = vadd.f32 %v883, %v1357
        %1359 = vmatprep.mubr.f32.mxu0 0.0
        %1360 = vmatmul.mubr.f32.gmra.mxu0 %v915
        %v1361 = vpop.f32.mrf.mxu0
        %v1362 = vadd.f32 %v888, %v1361
        %v1363 = vpop.f32.mrf.mxu0
        %v1364 = vadd.f32 %v888, %v1363
        %1365 = vmatprep.mubr.f32.mxu0 0.0
        %1366 = vmatmul.mubr.f32.gmra.mxu0 %v918
        %v1367 = vpop.f32.mrf.mxu0
        %v1368 = vadd.f32 %v893, %v1367
        %v1369 = vpop.f32.mrf.mxu0
        %v1370 = vadd.f32 %v893, %v1369
        %1371 = vdwg.mxu0
        %v1372 = vtanh.pop %v987
        %v1373 = vtanh.pop %v989
        %v1374 = vtanh.pop %v1100
        %v1375 = vtanh.pop %v1102
        %v1376 = vtanh.pop %v1213
        %v1377 = vtanh.pop %v1215
        %v1378 = vtanh.pop %v1326
        %v1379 = vtanh.pop %v1328
        %v1380 = vtanh.pop %v993
        %v1381 = vtanh.pop %v995
        %v1382 = vtanh.pop %v1106
        %v1383 = vtanh.pop %v1108
        %v1384 = vtanh.pop %v1219
        %v1385 = vtanh.pop %v1221
        %v1386 = vtanh.pop %v1332
        %v1387 = vtanh.pop %v1334
        %v1388 = vtanh.pop %v999
        %v1389 = vtanh.pop %v1001
        %v1390 = vtanh.pop %v1112
        %v1391 = vtanh.pop %v1114
        %v1392 = vtanh.pop %v1225
        %v1393 = vtanh.pop %v1227
        %v1394 = vtanh.pop %v1338
        %v1395 = vtanh.pop %v1340
        %v1396 = vtanh.pop %v1005
        %v1397 = vtanh.pop %v1007
        %v1398 = vtanh.pop %v1118
        %v1399 = vtanh.pop %v1120
        %v1400 = vtanh.pop %v1231
        %v1401 = vtanh.pop %v1233
        %v1402 = vtanh.pop %v1344
        %v1403 = vtanh.pop %v1346
        %v1404 = vtanh.pop %v1011
        %v1405 = vtanh.pop %v1013
        %v1406 = vtanh.pop %v1124
        %v1407 = vtanh.pop %v1126
        %v1408 = vtanh.pop %v1237
        %v1409 = vtanh.pop %v1239
        %v1410 = vtanh.pop %v1350
        %v1411 = vtanh.pop %v1352
        %v1412 = vtanh.pop %v1017
        %v1413 = vtanh.pop %v1019
        %v1414 = vtanh.pop %v1130
        %v1415 = vtanh.pop %v1132
        %v1416 = vtanh.pop %v1243
        %v1417 = vtanh.pop %v1245
        %v1418 = vtanh.pop %v1356
        %v1419 = vtanh.pop %v1358
        %v1420 = vtanh.pop %v1023
        %v1421 = vtanh.pop %v1025
        %v1422 = vtanh.pop %v1136
        %v1423 = vtanh.pop %v1138
        %v1424 = vtanh.pop %v1249
        %v1425 = vtanh.pop %v1251
        %v1426 = vtanh.pop %v1362
        %v1427 = vtanh.pop %v1364
        %v1428 = vtanh.pop %v1029
        %v1429 = vtanh.pop %v1031
        %v1430 = vtanh.pop %v1142
        %v1431 = vtanh.pop %v1144
        %v1432 = vtanh.pop %v1255
        %v1433 = vtanh.pop %v1257
        %v1434 = vtanh.pop %v1368
        %v1435 = vtanh.pop %v1370
        %s1436 = scalar_lea.vmem %s2, 64
        %v1437 = vld [vmem:[%s1436] sm:$0xff]
        %v1438 = vld [vmem:[%s1436 + $0x8] sm:$0xff]
        %v1439 = vld [vmem:[%s1436 + $0x10] sm:$0xff]
        %v1440 = vld [vmem:[%s1436 + $0x18] sm:$0xff]
        %v1441 = vld [vmem:[%s1436 + $0x20] sm:$0xff]
        %v1442 = vld [vmem:[%s1436 + $0x28] sm:$0xff]
        %v1443 = vld [vmem:[%s1436 + $0x30] sm:$0xff]
        %v1444 = vld [vmem:[%s1436 + $0x38] sm:$0xff]
        %1446 = vset.pattern.permute.xlu0 0
        %1447 = vperm.xlu0 %1446, %v252
        %v1448 = vpop.permute.xlu0 %1447
        %1451 = vset.pattern.permute.xlu0 0
        %1452 = vperm.xlu0 %1451, %v253
        %v1453 = vpop.permute.xlu0 %1452
        %1456 = vset.pattern.permute.xlu0 0
        %1457 = vperm.xlu0 %1456, %v254
        %v1458 = vpop.permute.xlu0 %1457
        %1461 = vset.pattern.permute.xlu0 0
        %1462 = vperm.xlu0 %1461, %v255
        %v1463 = vpop.permute.xlu0 %1462
        %1466 = vset.pattern.permute.xlu0 0
        %1467 = vperm.xlu0 %1466, %v256
        %v1468 = vpop.permute.xlu0 %1467
        %1471 = vset.pattern.permute.xlu0 0
        %1472 = vperm.xlu0 %1471, %v257
        %v1473 = vpop.permute.xlu0 %1472
        %1476 = vset.pattern.permute.xlu0 0
        %1477 = vperm.xlu0 %1476, %v258
        %v1478 = vpop.permute.xlu0 %1477
        %1481 = vset.pattern.permute.xlu0 0
        %1482 = vperm.xlu0 %1481, %v259
        %v1483 = vpop.permute.xlu0 %1482
        %v1486 = vsel %vm895, %v1437, 0
        %v1489 = vsel %vm895, %v1438, 0
        %v1492 = vsel %vm895, %v1439, 0
        %v1495 = vsel %vm895, %v1440, 0
        %v1498 = vsel %vm895, %v1441, 0
        %v1501 = vsel %vm895, %v1442, 0
        %v1504 = vsel %vm895, %v1443, 0
        %v1507 = vsel %vm895, %v1444, 0
        %1509 = vmatprep.subr.mxu0 0.0
        %1510 = vmatpush1.msra.mxu0 0.0
        %1511 = vmatprep.subr.mxu0 0.0
        %1512 = vmatpush1.msra.mxu0 0.0
        %1513 = vmatprep.subr.mxu0 0.0
        %1514 = vmatpush1.msra.mxu0 0.0
        %1515 = vmatprep.subr.mxu0 0.0
        %1516 = vmatpush1.msra.mxu0 0.0
        %1517 = vmatprep.subr.mxu0 0.0
        %1518 = vmatpush1.msra.mxu0 0.0
        %1519 = vmatprep.subr.mxu0 0.0
        %1520 = vmatpush1.msra.mxu0 0.0
        %1521 = vmatprep.subr.mxu0 0.0
        %1522 = vmatpush1.msra.mxu0 0.0
        %1523 = vmatprep.subr.mxu0 0.0
        %1524 = vmatpush1.msra.mxu0 0.0
        %1525 = vmatprep.subr.mxu0 %v1429
        %1526 = vmatpush1.msra.mxu0 %v1428
        %1527 = vmatprep.subr.mxu0 %v1421
        %1528 = vmatpush1.msra.mxu0 %v1420
        %1529 = vmatprep.subr.mxu0 %v1413
        %1530 = vmatpush1.msra.mxu0 %v1412
        %1531 = vmatprep.subr.mxu0 %v1405
        %1532 = vmatpush1.msra.mxu0 %v1404
        %1533 = vmatprep.subr.mxu0 %v1397
        %1534 = vmatpush1.msra.mxu0 %v1396
        %1535 = vmatprep.subr.mxu0 %v1389
        %1536 = vmatpush1.msra.mxu0 %v1388
        %1537 = vmatprep.subr.mxu0 %v1381
        %1538 = vmatpush1.msra.mxu0 %v1380
        %1539 = vmatprep.subr.mxu0 %v1373
        %1540 = vmatpush1.msra.mxu0 %v1372
        %1541 = vmatprep.subr.mxu0 0.0
        %1542 = vmatpush2.msra.mxu0 0.0
        %1543 = vmatprep.subr.mxu0 0.0
        %1544 = vmatpush2.msra.mxu0 0.0
        %1545 = vmatprep.subr.mxu0 0.0
        %1546 = vmatpush2.msra.mxu0 0.0
        %1547 = vmatprep.subr.mxu0 0.0
        %1548 = vmatpush2.msra.mxu0 0.0
        %1549 = vmatprep.subr.mxu0 0.0
        %1550 = vmatpush2.msra.mxu0 0.0
        %1551 = vmatprep.subr.mxu0 0.0
        %1552 = vmatpush2.msra.mxu0 0.0
        %1553 = vmatprep.subr.mxu0 0.0
        %1554 = vmatpush2.msra.mxu0 0.0
        %1555 = vmatprep.subr.mxu0 0.0
        %1556 = vmatpush2.msra.mxu0 0.0
        %1557 = vmatprep.subr.mxu0 0.0
        %1558 = vmatpush2.msra.mxu0 0.0
        %1559 = vmatprep.subr.mxu0 0.0
        %1560 = vmatpush2.msra.mxu0 0.0
        %1561 = vmatprep.subr.mxu0 0.0
        %1562 = vmatpush2.msra.mxu0 0.0
        %1563 = vmatprep.subr.mxu0 0.0
        %1564 = vmatpush2.msra.mxu0 0.0
        %1565 = vmatprep.subr.mxu0 0.0
        %1566 = vmatpush2.msra.mxu0 0.0
        %1567 = vmatprep.subr.mxu0 0.0
        %1568 = vmatpush2.msra.mxu0 0.0
        %1569 = vmatprep.subr.mxu0 0.0
        %1570 = vmatpush2.msra.mxu0 0.0
        %1571 = vmatprep.subr.mxu0 0.0
        %1572 = vmatpush2.msra.mxu0 0.0
        %1573 = vmatprep.mubr.f32.mxu0 0.0
        %1574 = vmatmul.mubr.f32.gmra.mxu0 %v1486
        %v1575 = vpop.f32.mrf.mxu0
        %v1576 = vadd.f32 %v1448, %v1575
        %v1577 = vpop.f32.mrf.mxu0
        %v1578 = vadd.f32 %v1448, %v1577
        %1579 = vmatprep.mubr.f32.mxu0 0.0
        %1580 = vmatmul.mubr.f32.gmra.mxu0 %v1489
        %v1581 = vpop.f32.mrf.mxu0
        %v1582 = vadd.f32 %v1453, %v1581
        %v1583 = vpop.f32.mrf.mxu0
        %v1584 = vadd.f32 %v1453, %v1583
        %1585 = vmatprep.mubr.f32.mxu0 0.0
        %1586 = vmatmul.mubr.f32.gmra.mxu0 %v1492
        %v1587 = vpop.f32.mrf.mxu0
        %v1588 = vadd.f32 %v1458, %v1587
        %v1589 = vpop.f32.mrf.mxu0
        %v1590 = vadd.f32 %v1458, %v1589
        %1591 = vmatprep.mubr.f32.mxu0 0.0
        %1592 = vmatmul.mubr.f32.gmra.mxu0 %v1495
        %v1593 = vpop.f32.mrf.mxu0
        %v1594 = vadd.f32 %v1463, %v1593
        %v1595 = vpop.f32.mrf.mxu0
        %v1596 = vadd.f32 %v1463, %v1595
        %1597 = vmatprep.mubr.f32.mxu0 0.0
        %1598 = vmatmul.mubr.f32.gmra.mxu0 %v1498
        %v1599 = vpop.f32.mrf.mxu0
        %v1600 = vadd.f32 %v1468, %v1599
        %v1601 = vpop.f32.mrf.mxu0
        %v1602 = vadd.f32 %v1468, %v1601
        %1603 = vmatprep.mubr.f32.mxu0 0.0
        %1604 = vmatmul.mubr.f32.gmra.mxu0 %v1501
        %v1605 = vpop.f32.mrf.mxu0
        %v1606 = vadd.f32 %v1473, %v1605
        %v1607 = vpop.f32.mrf.mxu0
        %v1608 = vadd.f32 %v1473, %v1607
        %1609 = vmatprep.mubr.f32.mxu0 0.0
        %1610 = vmatmul.mubr.f32.gmra.mxu0 %v1504
        %v1611 = vpop.f32.mrf.mxu0
        %v1612 = vadd.f32 %v1478, %v1611
        %v1613 = vpop.f32.mrf.mxu0
        %v1614 = vadd.f32 %v1478, %v1613
        %1615 = vmatprep.mubr.f32.mxu0 0.0
        %1616 = vmatmul.mubr.f32.gmra.mxu0 %v1507
        %v1617 = vpop.f32.mrf.mxu0
        %v1618 = vadd.f32 %v1483, %v1617
        %v1619 = vpop.f32.mrf.mxu0
        %v1620 = vadd.f32 %v1483, %v1619
        %1621 = vdwg.mxu0
        %1622 = vmatprep.subr.mxu0 0.0
        %1623 = vmatpush1.msra.mxu0 0.0
        %1624 = vmatprep.subr.mxu0 0.0
        %1625 = vmatpush1.msra.mxu0 0.0
        %1626 = vmatprep.subr.mxu0 0.0
        %1627 = vmatpush1.msra.mxu0 0.0
        %1628 = vmatprep.subr.mxu0 0.0
        %1629 = vmatpush1.msra.mxu0 0.0
        %1630 = vmatprep.subr.mxu0 0.0
        %1631 = vmatpush1.msra.mxu0 0.0
        %1632 = vmatprep.subr.mxu0 0.0
        %1633 = vmatpush1.msra.mxu0 0.0
        %1634 = vmatprep.subr.mxu0 0.0
        %1635 = vmatpush1.msra.mxu0 0.0
        %1636 = vmatprep.subr.mxu0 0.0
        %1637 = vmatpush1.msra.mxu0 0.0
        %1638 = vmatprep.subr.mxu0 %v1431
        %1639 = vmatpush1.msra.mxu0 %v1430
        %1640 = vmatprep.subr.mxu0 %v1423
        %1641 = vmatpush1.msra.mxu0 %v1422
        %1642 = vmatprep.subr.mxu0 %v1415
        %1643 = vmatpush1.msra.mxu0 %v1414
        %1644 = vmatprep.subr.mxu0 %v1407
        %1645 = vmatpush1.msra.mxu0 %v1406
        %1646 = vmatprep.subr.mxu0 %v1399
        %1647 = vmatpush1.msra.mxu0 %v1398
        %1648 = vmatprep.subr.mxu0 %v1391
        %1649 = vmatpush1.msra.mxu0 %v1390
        %1650 = vmatprep.subr.mxu0 %v1383
        %1651 = vmatpush1.msra.mxu0 %v1382
        %1652 = vmatprep.subr.mxu0 %v1375
        %1653 = vmatpush1.msra.mxu0 %v1374
        %1654 = vmatprep.subr.mxu0 0.0
        %1655 = vmatpush2.msra.mxu0 0.0
        %1656 = vmatprep.subr.mxu0 0.0
        %1657 = vmatpush2.msra.mxu0 0.0
        %1658 = vmatprep.subr.mxu0 0.0
        %1659 = vmatpush2.msra.mxu0 0.0
        %1660 = vmatprep.subr.mxu0 0.0
        %1661 = vmatpush2.msra.mxu0 0.0
        %1662 = vmatprep.subr.mxu0 0.0
        %1663 = vmatpush2.msra.mxu0 0.0
        %1664 = vmatprep.subr.mxu0 0.0
        %1665 = vmatpush2.msra.mxu0 0.0
        %1666 = vmatprep.subr.mxu0 0.0
        %1667 = vmatpush2.msra.mxu0 0.0
        %1668 = vmatprep.subr.mxu0 0.0
        %1669 = vmatpush2.msra.mxu0 0.0
        %1670 = vmatprep.subr.mxu0 0.0
        %1671 = vmatpush2.msra.mxu0 0.0
        %1672 = vmatprep.subr.mxu0 0.0
        %1673 = vmatpush2.msra.mxu0 0.0
        %1674 = vmatprep.subr.mxu0 0.0
        %1675 = vmatpush2.msra.mxu0 0.0
        %1676 = vmatprep.subr.mxu0 0.0
        %1677 = vmatpush2.msra.mxu0 0.0
        %1678 = vmatprep.subr.mxu0 0.0
        %1679 = vmatpush2.msra.mxu0 0.0
        %1680 = vmatprep.subr.mxu0 0.0
        %1681 = vmatpush2.msra.mxu0 0.0
        %1682 = vmatprep.subr.mxu0 0.0
        %1683 = vmatpush2.msra.mxu0 0.0
        %1684 = vmatprep.subr.mxu0 0.0
        %1685 = vmatpush2.msra.mxu0 0.0
        %1686 = vmatprep.mubr.f32.mxu0 0.0
        %1687 = vmatmul.mubr.f32.gmra.mxu0 %v1486
        %v1688 = vpop.f32.mrf.mxu0
        %v1689 = vadd.f32 %v1448, %v1688
        %v1690 = vpop.f32.mrf.mxu0
        %v1691 = vadd.f32 %v1448, %v1690
        %1692 = vmatprep.mubr.f32.mxu0 0.0
        %1693 = vmatmul.mubr.f32.gmra.mxu0 %v1489
        %v1694 = vpop.f32.mrf.mxu0
        %v1695 = vadd.f32 %v1453, %v1694
        %v1696 = vpop.f32.mrf.mxu0
        %v1697 = vadd.f32 %v1453, %v1696
        %1698 = vmatprep.mubr.f32.mxu0 0.0
        %1699 = vmatmul.mubr.f32.gmra.mxu0 %v1492
        %v1700 = vpop.f32.mrf.mxu0
        %v1701 = vadd.f32 %v1458, %v1700
        %v1702 = vpop.f32.mrf.mxu0
        %v1703 = vadd.f32 %v1458, %v1702
        %1704 = vmatprep.mubr.f32.mxu0 0.0
        %1705 = vmatmul.mubr.f32.gmra.mxu0 %v1495
        %v1706 = vpop.f32.mrf.mxu0
        %v1707 = vadd.f32 %v1463, %v1706
        %v1708 = vpop.f32.mrf.mxu0
        %v1709 = vadd.f32 %v1463, %v1708
        %1710 = vmatprep.mubr.f32.mxu0 0.0
        %1711 = vmatmul.mubr.f32.gmra.mxu0 %v1498
        %v1712 = vpop.f32.mrf.mxu0
        %v1713 = vadd.f32 %v1468, %v1712
        %v1714 = vpop.f32.mrf.mxu0
        %v1715 = vadd.f32 %v1468, %v1714
        %1716 = vmatprep.mubr.f32.mxu0 0.0
        %1717 = vmatmul.mubr.f32.gmra.mxu0 %v1501
        %v1718 = vpop.f32.mrf.mxu0
        %v1719 = vadd.f32 %v1473, %v1718
        %v1720 = vpop.f32.mrf.mxu0
        %v1721 = vadd.f32 %v1473, %v1720
        %1722 = vmatprep.mubr.f32.mxu0 0.0
        %1723 = vmatmul.mubr.f32.gmra.mxu0 %v1504
        %v1724 = vpop.f32.mrf.mxu0
        %v1725 = vadd.f32 %v1478, %v1724
        %v1726 = vpop.f32.mrf.mxu0
        %v1727 = vadd.f32 %v1478, %v1726
        %1728 = vmatprep.mubr.f32.mxu0 0.0
        %1729 = vmatmul.mubr.f32.gmra.mxu0 %v1507
        %v1730 = vpop.f32.mrf.mxu0
        %v1731 = vadd.f32 %v1483, %v1730
        %v1732 = vpop.f32.mrf.mxu0
        %v1733 = vadd.f32 %v1483, %v1732
        %1734 = vdwg.mxu0
        %1735 = vmatprep.subr.mxu0 0.0
        %1736 = vmatpush1.msra.mxu0 0.0
        %1737 = vmatprep.subr.mxu0 0.0
        %1738 = vmatpush1.msra.mxu0 0.0
        %1739 = vmatprep.subr.mxu0 0.0
        %1740 = vmatpush1.msra.mxu0 0.0
        %1741 = vmatprep.subr.mxu0 0.0
        %1742 = vmatpush1.msra.mxu0 0.0
        %1743 = vmatprep.subr.mxu0 0.0
        %1744 = vmatpush1.msra.mxu0 0.0
        %1745 = vmatprep.subr.mxu0 0.0
        %1746 = vmatpush1.msra.mxu0 0.0
        %1747 = vmatprep.subr.mxu0 0.0
        %1748 = vmatpush1.msra.mxu0 0.0
        %1749 = vmatprep.subr.mxu0 0.0
        %1750 = vmatpush1.msra.mxu0 0.0
        %1751 = vmatprep.subr.mxu0 %v1433
        %1752 = vmatpush1.msra.mxu0 %v1432
        %1753 = vmatprep.subr.mxu0 %v1425
        %1754 = vmatpush1.msra.mxu0 %v1424
        %1755 = vmatprep.subr.mxu0 %v1417
        %1756 = vmatpush1.msra.mxu0 %v1416
        %1757 = vmatprep.subr.mxu0 %v1409
        %1758 = vmatpush1.msra.mxu0 %v1408
        %1759 = vmatprep.subr.mxu0 %v1401
        %1760 = vmatpush1.msra.mxu0 %v1400
        %1761 = vmatprep.subr.mxu0 %v1393
        %1762 = vmatpush1.msra.mxu0 %v1392
        %1763 = vmatprep.subr.mxu0 %v1385
        %1764 = vmatpush1.msra.mxu0 %v1384
        %1765 = vmatprep.subr.mxu0 %v1377
        %1766 = vmatpush1.msra.mxu0 %v1376
        %1767 = vmatprep.subr.mxu0 0.0
        %1768 = vmatpush2.msra.mxu0 0.0
        %1769 = vmatprep.subr.mxu0 0.0
        %1770 = vmatpush2.msra.mxu0 0.0
        %1771 = vmatprep.subr.mxu0 0.0
        %1772 = vmatpush2.msra.mxu0 0.0
        %1773 = vmatprep.subr.mxu0 0.0
        %1774 = vmatpush2.msra.mxu0 0.0
        %1775 = vmatprep.subr.mxu0 0.0
        %1776 = vmatpush2.msra.mxu0 0.0
        %1777 = vmatprep.subr.mxu0 0.0
        %1778 = vmatpush2.msra.mxu0 0.0
        %1779 = vmatprep.subr.mxu0 0.0
        %1780 = vmatpush2.msra.mxu0 0.0
        %1781 = vmatprep.subr.mxu0 0.0
        %1782 = vmatpush2.msra.mxu0 0.0
        %1783 = vmatprep.subr.mxu0 0.0
        %1784 = vmatpush2.msra.mxu0 0.0
        %1785 = vmatprep.subr.mxu0 0.0
        %1786 = vmatpush2.msra.mxu0 0.0
        %1787 = vmatprep.subr.mxu0 0.0
        %1788 = vmatpush2.msra.mxu0 0.0
        %1789 = vmatprep.subr.mxu0 0.0
        %1790 = vmatpush2.msra.mxu0 0.0
        %1791 = vmatprep.subr.mxu0 0.0
        %1792 = vmatpush2.msra.mxu0 0.0
        %1793 = vmatprep.subr.mxu0 0.0
        %1794 = vmatpush2.msra.mxu0 0.0
        %1795 = vmatprep.subr.mxu0 0.0
        %1796 = vmatpush2.msra.mxu0 0.0
        %1797 = vmatprep.subr.mxu0 0.0
        %1798 = vmatpush2.msra.mxu0 0.0
        %1799 = vmatprep.mubr.f32.mxu0 0.0
        %1800 = vmatmul.mubr.f32.gmra.mxu0 %v1486
        %v1801 = vpop.f32.mrf.mxu0
        %v1802 = vadd.f32 %v1448, %v1801
        %v1803 = vpop.f32.mrf.mxu0
        %v1804 = vadd.f32 %v1448, %v1803
        %1805 = vmatprep.mubr.f32.mxu0 0.0
        %1806 = vmatmul.mubr.f32.gmra.mxu0 %v1489
        %v1807 = vpop.f32.mrf.mxu0
        %v1808 = vadd.f32 %v1453, %v1807
        %v1809 = vpop.f32.mrf.mxu0
        %v1810 = vadd.f32 %v1453, %v1809
        %1811 = vmatprep.mubr.f32.mxu0 0.0
        %1812 = vmatmul.mubr.f32.gmra.mxu0 %v1492
        %v1813 = vpop.f32.mrf.mxu0
        %v1814 = vadd.f32 %v1458, %v1813
        %v1815 = vpop.f32.mrf.mxu0
        %v1816 = vadd.f32 %v1458, %v1815
        %1817 = vmatprep.mubr.f32.mxu0 0.0
        %1818 = vmatmul.mubr.f32.gmra.mxu0 %v1495
        %v1819 = vpop.f32.mrf.mxu0
        %v1820 = vadd.f32 %v1463, %v1819
        %v1821 = vpop.f32.mrf.mxu0
        %v1822 = vadd.f32 %v1463, %v1821
        %1823 = vmatprep.mubr.f32.mxu0 0.0
        %1824 = vmatmul.mubr.f32.gmra.mxu0 %v1498
        %v1825 = vpop.f32.mrf.mxu0
        %v1826 = vadd.f32 %v1468, %v1825
        %v1827 = vpop.f32.mrf.mxu0
        %v1828 = vadd.f32 %v1468, %v1827
        %1829 = vmatprep.mubr.f32.mxu0 0.0
        %1830 = vmatmul.mubr.f32.gmra.mxu0 %v1501
        %v1831 = vpop.f32.mrf.mxu0
        %v1832 = vadd.f32 %v1473, %v1831
        %v1833 = vpop.f32.mrf.mxu0
        %v1834 = vadd.f32 %v1473, %v1833
        %1835 = vmatprep.mubr.f32.mxu0 0.0
        %1836 = vmatmul.mubr.f32.gmra.mxu0 %v1504
        %v1837 = vpop.f32.mrf.mxu0
        %v1838 = vadd.f32 %v1478, %v1837
        %v1839 = vpop.f32.mrf.mxu0
        %v1840 = vadd.f32 %v1478, %v1839
        %1841 = vmatprep.mubr.f32.mxu0 0.0
        %1842 = vmatmul.mubr.f32.gmra.mxu0 %v1507
        %v1843 = vpop.f32.mrf.mxu0
        %v1844 = vadd.f32 %v1483, %v1843
        %v1845 = vpop.f32.mrf.mxu0
        %v1846 = vadd.f32 %v1483, %v1845
        %1847 = vdwg.mxu0
        %1848 = vmatprep.subr.mxu0 0.0
        %1849 = vmatpush1.msra.mxu0 0.0
        %1850 = vmatprep.subr.mxu0 0.0
        %1851 = vmatpush1.msra.mxu0 0.0
        %1852 = vmatprep.subr.mxu0 0.0
        %1853 = vmatpush1.msra.mxu0 0.0
        %1854 = vmatprep.subr.mxu0 0.0
        %1855 = vmatpush1.msra.mxu0 0.0
        %1856 = vmatprep.subr.mxu0 0.0
        %1857 = vmatpush1.msra.mxu0 0.0
        %1858 = vmatprep.subr.mxu0 0.0
        %1859 = vmatpush1.msra.mxu0 0.0
        %1860 = vmatprep.subr.mxu0 0.0
        %1861 = vmatpush1.msra.mxu0 0.0
        %1862 = vmatprep.subr.mxu0 0.0
        %1863 = vmatpush1.msra.mxu0 0.0
        %1864 = vmatprep.subr.mxu0 %v1435
        %1865 = vmatpush1.msra.mxu0 %v1434
        %1866 = vmatprep.subr.mxu0 %v1427
        %1867 = vmatpush1.msra.mxu0 %v1426
        %1868 = vmatprep.subr.mxu0 %v1419
        %1869 = vmatpush1.msra.mxu0 %v1418
        %1870 = vmatprep.subr.mxu0 %v1411
        %1871 = vmatpush1.msra.mxu0 %v1410
        %1872 = vmatprep.subr.mxu0 %v1403
        %1873 = vmatpush1.msra.mxu0 %v1402
        %1874 = vmatprep.subr.mxu0 %v1395
        %1875 = vmatpush1.msra.mxu0 %v1394
        %1876 = vmatprep.subr.mxu0 %v1387
        %1877 = vmatpush1.msra.mxu0 %v1386
        %1878 = vmatprep.subr.mxu0 %v1379
        %1879 = vmatpush1.msra.mxu0 %v1378
        %1880 = vmatprep.subr.mxu0 0.0
        %1881 = vmatpush2.msra.mxu0 0.0
        %1882 = vmatprep.subr.mxu0 0.0
        %1883 = vmatpush2.msra.mxu0 0.0
        %1884 = vmatprep.subr.mxu0 0.0
        %1885 = vmatpush2.msra.mxu0 0.0
        %1886 = vmatprep.subr.mxu0 0.0
        %1887 = vmatpush2.msra.mxu0 0.0
        %1888 = vmatprep.subr.mxu0 0.0
        %1889 = vmatpush2.msra.mxu0 0.0
        %1890 = vmatprep.subr.mxu0 0.0
        %1891 = vmatpush2.msra.mxu0 0.0
        %1892 = vmatprep.subr.mxu0 0.0
        %1893 = vmatpush2.msra.mxu0 0.0
        %1894 = vmatprep.subr.mxu0 0.0
        %1895 = vmatpush2.msra.mxu0 0.0
        %1896 = vmatprep.subr.mxu0 0.0
        %1897 = vmatpush2.msra.mxu0 0.0
        %1898 = vmatprep.subr.mxu0 0.0
        %1899 = vmatpush2.msra.mxu0 0.0
        %1900 = vmatprep.subr.mxu0 0.0
        %1901 = vmatpush2.msra.mxu0 0.0
        %1902 = vmatprep.subr.mxu0 0.0
        %1903 = vmatpush2.msra.mxu0 0.0
        %1904 = vmatprep.subr.mxu0 0.0
        %1905 = vmatpush2.msra.mxu0 0.0
        %1906 = vmatprep.subr.mxu0 0.0
        %1907 = vmatpush2.msra.mxu0 0.0
        %1908 = vmatprep.subr.mxu0 0.0
        %1909 = vmatpush2.msra.mxu0 0.0
        %1910 = vmatprep.subr.mxu0 0.0
        %1911 = vmatpush2.msra.mxu0 0.0
        %1912 = vmatprep.mubr.f32.mxu0 0.0
        %1913 = vmatmul.mubr.f32.gmra.mxu0 %v1486
        %v1914 = vpop.f32.mrf.mxu0
        %v1915 = vadd.f32 %v1448, %v1914
        %v1916 = vpop.f32.mrf.mxu0
        %v1917 = vadd.f32 %v1448, %v1916
        %1918 = vmatprep.mubr.f32.mxu0 0.0
        %1919 = vmatmul.mubr.f32.gmra.mxu0 %v1489
        %v1920 = vpop.f32.mrf.mxu0
        %v1921 = vadd.f32 %v1453, %v1920
        %v1922 = vpop.f32.mrf.mxu0
        %v1923 = vadd.f32 %v1453, %v1922
        %1924 = vmatprep.mubr.f32.mxu0 0.0
        %1925 = vmatmul.mubr.f32.gmra.mxu0 %v1492
        %v1926 = vpop.f32.mrf.mxu0
        %v1927 = vadd.f32 %v1458, %v1926
        %v1928 = vpop.f32.mrf.mxu0
        %v1929 = vadd.f32 %v1458, %v1928
        %1930 = vmatprep.mubr.f32.mxu0 0.0
        %1931 = vmatmul.mubr.f32.gmra.mxu0 %v1495
        %v1932 = vpop.f32.mrf.mxu0
        %v1933 = vadd.f32 %v1463, %v1932
        %v1934 = vpop.f32.mrf.mxu0
        %v1935 = vadd.f32 %v1463, %v1934
        %1936 = vmatprep.mubr.f32.mxu0 0.0
        %1937 = vmatmul.mubr.f32.gmra.mxu0 %v1498
        %v1938 = vpop.f32.mrf.mxu0
        %v1939 = vadd.f32 %v1468, %v1938
        %v1940 = vpop.f32.mrf.mxu0
        %v1941 = vadd.f32 %v1468, %v1940
        %1942 = vmatprep.mubr.f32.mxu0 0.0
        %1943 = vmatmul.mubr.f32.gmra.mxu0 %v1501
        %v1944 = vpop.f32.mrf.mxu0
        %v1945 = vadd.f32 %v1473, %v1944
        %v1946 = vpop.f32.mrf.mxu0
        %v1947 = vadd.f32 %v1473, %v1946
        %1948 = vmatprep.mubr.f32.mxu0 0.0
        %1949 = vmatmul.mubr.f32.gmra.mxu0 %v1504
        %v1950 = vpop.f32.mrf.mxu0
        %v1951 = vadd.f32 %v1478, %v1950
        %v1952 = vpop.f32.mrf.mxu0
        %v1953 = vadd.f32 %v1478, %v1952
        %1954 = vmatprep.mubr.f32.mxu0 0.0
        %1955 = vmatmul.mubr.f32.gmra.mxu0 %v1507
        %v1956 = vpop.f32.mrf.mxu0
        %v1957 = vadd.f32 %v1483, %v1956
        %v1958 = vpop.f32.mrf.mxu0
        %v1959 = vadd.f32 %v1483, %v1958
        %1960 = vdwg.mxu0
        %v1961 = vtanh.pop %v1576
        %v1962 = vtanh.pop %v1578
        %v1963 = vtanh.pop %v1689
        %v1964 = vtanh.pop %v1691
        %v1965 = vtanh.pop %v1802
        %v1966 = vtanh.pop %v1804
        %v1967 = vtanh.pop %v1915
        %v1968 = vtanh.pop %v1917
        %v1969 = vtanh.pop %v1582
        %v1970 = vtanh.pop %v1584
        %v1971 = vtanh.pop %v1695
        %v1972 = vtanh.pop %v1697
        %v1973 = vtanh.pop %v1808
        %v1974 = vtanh.pop %v1810
        %v1975 = vtanh.pop %v1921
        %v1976 = vtanh.pop %v1923
        %v1977 = vtanh.pop %v1588
        %v1978 = vtanh.pop %v1590
        %v1979 = vtanh.pop %v1701
        %v1980 = vtanh.pop %v1703
        %v1981 = vtanh.pop %v1814
        %v1982 = vtanh.pop %v1816
        %v1983 = vtanh.pop %v1927
        %v1984 = vtanh.pop %v1929
        %v1985 = vtanh.pop %v1594
        %v1986 = vtanh.pop %v1596
        %v1987 = vtanh.pop %v1707
        %v1988 = vtanh.pop %v1709
        %v1989 = vtanh.pop %v1820
        %v1990 = vtanh.pop %v1822
        %v1991 = vtanh.pop %v1933
        %v1992 = vtanh.pop %v1935
        %v1993 = vtanh.pop %v1600
        %v1994 = vtanh.pop %v1602
        %v1995 = vtanh.pop %v1713
        %v1996 = vtanh.pop %v1715
        %v1997 = vtanh.pop %v1826
        %v1998 = vtanh.pop %v1828
        %v1999 = vtanh.pop %v1939
        %v2000 = vtanh.pop %v1941
        %v2001 = vtanh.pop %v1606
        %v2002 = vtanh.pop %v1608
        %v2003 = vtanh.pop %v1719
        %v2004 = vtanh.pop %v1721
        %v2005 = vtanh.pop %v1832
        %v2006 = vtanh.pop %v1834
        %v2007 = vtanh.pop %v1945
        %v2008 = vtanh.pop %v1947
        %v2009 = vtanh.pop %v1612
        %v2010 = vtanh.pop %v1614
        %v2011 = vtanh.pop %v1725
        %v2012 = vtanh.pop %v1727
        %v2013 = vtanh.pop %v1838
        %v2014 = vtanh.pop %v1840
        %v2015 = vtanh.pop %v1951
        %v2016 = vtanh.pop %v1953
        %v2017 = vtanh.pop %v1618
        %v2018 = vtanh.pop %v1620
        %v2019 = vtanh.pop %v1731
        %v2020 = vtanh.pop %v1733
        %v2021 = vtanh.pop %v1844
        %v2022 = vtanh.pop %v1846
        %v2023 = vtanh.pop %v1957
        %v2024 = vtanh.pop %v1959
        %s2025 = scalar_lea.vmem %s2, 128
        %v2026 = vld [vmem:[%s2025] sm:$0xff]
        %v2027 = vld [vmem:[%s2025 + $0x8] sm:$0xff]
        %v2028 = vld [vmem:[%s2025 + $0x10] sm:$0xff]
        %v2029 = vld [vmem:[%s2025 + $0x18] sm:$0xff]
        %v2030 = vld [vmem:[%s2025 + $0x20] sm:$0xff]
        %v2031 = vld [vmem:[%s2025 + $0x28] sm:$0xff]
        %v2032 = vld [vmem:[%s2025 + $0x30] sm:$0xff]
        %v2033 = vld [vmem:[%s2025 + $0x38] sm:$0xff]
        %2035 = vset.pattern.permute.xlu0 0
        %2036 = vperm.xlu0 %2035, %v260
        %v2037 = vpop.permute.xlu0 %2036
        %2040 = vset.pattern.permute.xlu0 0
        %2041 = vperm.xlu0 %2040, %v261
        %v2042 = vpop.permute.xlu0 %2041
        %2045 = vset.pattern.permute.xlu0 0
        %2046 = vperm.xlu0 %2045, %v262
        %v2047 = vpop.permute.xlu0 %2046
        %2050 = vset.pattern.permute.xlu0 0
        %2051 = vperm.xlu0 %2050, %v263
        %v2052 = vpop.permute.xlu0 %2051
        %2055 = vset.pattern.permute.xlu0 0
        %2056 = vperm.xlu0 %2055, %v264
        %v2057 = vpop.permute.xlu0 %2056
        %2060 = vset.pattern.permute.xlu0 0
        %2061 = vperm.xlu0 %2060, %v265
        %v2062 = vpop.permute.xlu0 %2061
        %2065 = vset.pattern.permute.xlu0 0
        %2066 = vperm.xlu0 %2065, %v266
        %v2067 = vpop.permute.xlu0 %2066
        %2070 = vset.pattern.permute.xlu0 0
        %2071 = vperm.xlu0 %2070, %v267
        %v2072 = vpop.permute.xlu0 %2071
        %v2075 = vsel %vm895, %v2026, 0
        %v2078 = vsel %vm895, %v2027, 0
        %v2081 = vsel %vm895, %v2028, 0
        %v2084 = vsel %vm895, %v2029, 0
        %v2087 = vsel %vm895, %v2030, 0
        %v2090 = vsel %vm895, %v2031, 0
        %v2093 = vsel %vm895, %v2032, 0
        %v2096 = vsel %vm895, %v2033, 0
        %2098 = vmatprep.subr.mxu0 0.0
        %2099 = vmatpush1.msra.mxu0 0.0
        %2100 = vmatprep.subr.mxu0 0.0
        %2101 = vmatpush1.msra.mxu0 0.0
        %2102 = vmatprep.subr.mxu0 0.0
        %2103 = vmatpush1.msra.mxu0 0.0
        %2104 = vmatprep.subr.mxu0 0.0
        %2105 = vmatpush1.msra.mxu0 0.0
        %2106 = vmatprep.subr.mxu0 0.0
        %2107 = vmatpush1.msra.mxu0 0.0
        %2108 = vmatprep.subr.mxu0 0.0
        %2109 = vmatpush1.msra.mxu0 0.0
        %2110 = vmatprep.subr.mxu0 0.0
        %2111 = vmatpush1.msra.mxu0 0.0
        %2112 = vmatprep.subr.mxu0 0.0
        %2113 = vmatpush1.msra.mxu0 0.0
        %2114 = vmatprep.subr.mxu0 %v2018
        %2115 = vmatpush1.msra.mxu0 %v2017
        %2116 = vmatprep.subr.mxu0 %v2010
        %2117 = vmatpush1.msra.mxu0 %v2009
        %2118 = vmatprep.subr.mxu0 %v2002
        %2119 = vmatpush1.msra.mxu0 %v2001
        %2120 = vmatprep.subr.mxu0 %v1994
        %2121 = vmatpush1.msra.mxu0 %v1993
        %2122 = vmatprep.subr.mxu0 %v1986
        %2123 = vmatpush1.msra.mxu0 %v1985
        %2124 = vmatprep.subr.mxu0 %v1978
        %2125 = vmatpush1.msra.mxu0 %v1977
        %2126 = vmatprep.subr.mxu0 %v1970
        %2127 = vmatpush1.msra.mxu0 %v1969
        %2128 = vmatprep.subr.mxu0 %v1962
        %2129 = vmatpush1.msra.mxu0 %v1961
        %2130 = vmatprep.subr.mxu0 0.0
        %2131 = vmatpush2.msra.mxu0 0.0
        %2132 = vmatprep.subr.mxu0 0.0
        %2133 = vmatpush2.msra.mxu0 0.0
        %2134 = vmatprep.subr.mxu0 0.0
        %2135 = vmatpush2.msra.mxu0 0.0
        %2136 = vmatprep.subr.mxu0 0.0
        %2137 = vmatpush2.msra.mxu0 0.0
        %2138 = vmatprep.subr.mxu0 0.0
        %2139 = vmatpush2.msra.mxu0 0.0
        %2140 = vmatprep.subr.mxu0 0.0
        %2141 = vmatpush2.msra.mxu0 0.0
        %2142 = vmatprep.subr.mxu0 0.0
        %2143 = vmatpush2.msra.mxu0 0.0
        %2144 = vmatprep.subr.mxu0 0.0
        %2145 = vmatpush2.msra.mxu0 0.0
        %2146 = vmatprep.subr.mxu0 0.0
        %2147 = vmatpush2.msra.mxu0 0.0
        %2148 = vmatprep.subr.mxu0 0.0
        %2149 = vmatpush2.msra.mxu0 0.0
        %2150 = vmatprep.subr.mxu0 0.0
        %2151 = vmatpush2.msra.mxu0 0.0
        %2152 = vmatprep.subr.mxu0 0.0
        %2153 = vmatpush2.msra.mxu0 0.0
        %2154 = vmatprep.subr.mxu0 0.0
        %2155 = vmatpush2.msra.mxu0 0.0
        %2156 = vmatprep.subr.mxu0 0.0
        %2157 = vmatpush2.msra.mxu0 0.0
        %2158 = vmatprep.subr.mxu0 0.0
        %2159 = vmatpush2.msra.mxu0 0.0
        %2160 = vmatprep.subr.mxu0 0.0
        %2161 = vmatpush2.msra.mxu0 0.0
        %2162 = vmatprep.mubr.f32.mxu0 0.0
        %2163 = vmatmul.mubr.f32.gmra.mxu0 %v2075
        %v2164 = vpop.f32.mrf.mxu0
        %v2165 = vadd.f32 %v2037, %v2164
        %v2166 = vpop.f32.mrf.mxu0
        %v2167 = vadd.f32 %v2037, %v2166
        %2168 = vmatprep.mubr.f32.mxu0 0.0
        %2169 = vmatmul.mubr.f32.gmra.mxu0 %v2078
        %v2170 = vpop.f32.mrf.mxu0
        %v2171 = vadd.f32 %v2042, %v2170
        %v2172 = vpop.f32.mrf.mxu0
        %v2173 = vadd.f32 %v2042, %v2172
        %2174 = vmatprep.mubr.f32.mxu0 0.0
        %2175 = vmatmul.mubr.f32.gmra.mxu0 %v2081
        %v2176 = vpop.f32.mrf.mxu0
        %v2177 = vadd.f32 %v2047, %v2176
        %v2178 = vpop.f32.mrf.mxu0
        %v2179 = vadd.f32 %v2047, %v2178
        %2180 = vmatprep.mubr.f32.mxu0 0.0
        %2181 = vmatmul.mubr.f32.gmra.mxu0 %v2084
        %v2182 = vpop.f32.mrf.mxu0
        %v2183 = vadd.f32 %v2052, %v2182
        %v2184 = vpop.f32.mrf.mxu0
        %v2185 = vadd.f32 %v2052, %v2184
        %2186 = vmatprep.mubr.f32.mxu0 0.0
        %2187 = vmatmul.mubr.f32.gmra.mxu0 %v2087
        %v2188 = vpop.f32.mrf.mxu0
        %v2189 = vadd.f32 %v2057, %v2188
        %v2190 = vpop.f32.mrf.mxu0
        %v2191 = vadd.f32 %v2057, %v2190
        %2192 = vmatprep.mubr.f32.mxu0 0.0
        %2193 = vmatmul.mubr.f32.gmra.mxu0 %v2090
        %v2194 = vpop.f32.mrf.mxu0
        %v2195 = vadd.f32 %v2062, %v2194
        %v2196 = vpop.f32.mrf.mxu0
        %v2197 = vadd.f32 %v2062, %v2196
        %2198 = vmatprep.mubr.f32.mxu0 0.0
        %2199 = vmatmul.mubr.f32.gmra.mxu0 %v2093
        %v2200 = vpop.f32.mrf.mxu0
        %v2201 = vadd.f32 %v2067, %v2200
        %v2202 = vpop.f32.mrf.mxu0
        %v2203 = vadd.f32 %v2067, %v2202
        %2204 = vmatprep.mubr.f32.mxu0 0.0
        %2205 = vmatmul.mubr.f32.gmra.mxu0 %v2096
        %v2206 = vpop.f32.mrf.mxu0
        %v2207 = vadd.f32 %v2072, %v2206
        %v2208 = vpop.f32.mrf.mxu0
        %v2209 = vadd.f32 %v2072, %v2208
        %2210 = vdwg.mxu0
        %2211 = vmatprep.subr.mxu0 0.0
        %2212 = vmatpush1.msra.mxu0 0.0
        %2213 = vmatprep.subr.mxu0 0.0
        %2214 = vmatpush1.msra.mxu0 0.0
        %2215 = vmatprep.subr.mxu0 0.0
        %2216 = vmatpush1.msra.mxu0 0.0
        %2217 = vmatprep.subr.mxu0 0.0
        %2218 = vmatpush1.msra.mxu0 0.0
        %2219 = vmatprep.subr.mxu0 0.0
        %2220 = vmatpush1.msra.mxu0 0.0
        %2221 = vmatprep.subr.mxu0 0.0
        %2222 = vmatpush1.msra.mxu0 0.0
        %2223 = vmatprep.subr.mxu0 0.0
        %2224 = vmatpush1.msra.mxu0 0.0
        %2225 = vmatprep.subr.mxu0 0.0
        %2226 = vmatpush1.msra.mxu0 0.0
        %2227 = vmatprep.subr.mxu0 %v2020
        %2228 = vmatpush1.msra.mxu0 %v2019
        %2229 = vmatprep.subr.mxu0 %v2012
        %2230 = vmatpush1.msra.mxu0 %v2011
        %2231 = vmatprep.subr.mxu0 %v2004
        %2232 = vmatpush1.msra.mxu0 %v2003
        %2233 = vmatprep.subr.mxu0 %v1996
        %2234 = vmatpush1.msra.mxu0 %v1995
        %2235 = vmatprep.subr.mxu0 %v1988
        %2236 = vmatpush1.msra.mxu0 %v1987
        %2237 = vmatprep.subr.mxu0 %v1980
        %2238 = vmatpush1.msra.mxu0 %v1979
        %2239 = vmatprep.subr.mxu0 %v1972
        %2240 = vmatpush1.msra.mxu0 %v1971
        %2241 = vmatprep.subr.mxu0 %v1964
        %2242 = vmatpush1.msra.mxu0 %v1963
        %2243 = vmatprep.subr.mxu0 0.0
        %2244 = vmatpush2.msra.mxu0 0.0
        %2245 = vmatprep.subr.mxu0 0.0
        %2246 = vmatpush2.msra.mxu0 0.0
        %2247 = vmatprep.subr.mxu0 0.0
        %2248 = vmatpush2.msra.mxu0 0.0
        %2249 = vmatprep.subr.mxu0 0.0
        %2250 = vmatpush2.msra.mxu0 0.0
        %2251 = vmatprep.subr.mxu0 0.0
        %2252 = vmatpush2.msra.mxu0 0.0
        %2253 = vmatprep.subr.mxu0 0.0
        %2254 = vmatpush2.msra.mxu0 0.0
        %2255 = vmatprep.subr.mxu0 0.0
        %2256 = vmatpush2.msra.mxu0 0.0
        %2257 = vmatprep.subr.mxu0 0.0
        %2258 = vmatpush2.msra.mxu0 0.0
        %2259 = vmatprep.subr.mxu0 0.0
        %2260 = vmatpush2.msra.mxu0 0.0
        %2261 = vmatprep.subr.mxu0 0.0
        %2262 = vmatpush2.msra.mxu0 0.0
        %2263 = vmatprep.subr.mxu0 0.0
        %2264 = vmatpush2.msra.mxu0 0.0
        %2265 = vmatprep.subr.mxu0 0.0
        %2266 = vmatpush2.msra.mxu0 0.0
        %2267 = vmatprep.subr.mxu0 0.0
        %2268 = vmatpush2.msra.mxu0 0.0
        %2269 = vmatprep.subr.mxu0 0.0
        %2270 = vmatpush2.msra.mxu0 0.0
        %2271 = vmatprep.subr.mxu0 0.0
        %2272 = vmatpush2.msra.mxu0 0.0
        %2273 = vmatprep.subr.mxu0 0.0
        %2274 = vmatpush2.msra.mxu0 0.0
        %2275 = vmatprep.mubr.f32.mxu0 0.0
        %2276 = vmatmul.mubr.f32.gmra.mxu0 %v2075
        %v2277 = vpop.f32.mrf.mxu0
        %v2278 = vadd.f32 %v2037, %v2277
        %v2279 = vpop.f32.mrf.mxu0
        %v2280 = vadd.f32 %v2037, %v2279
        %2281 = vmatprep.mubr.f32.mxu0 0.0
        %2282 = vmatmul.mubr.f32.gmra.mxu0 %v2078
        %v2283 = vpop.f32.mrf.mxu0
        %v2284 = vadd.f32 %v2042, %v2283
        %v2285 = vpop.f32.mrf.mxu0
        %v2286 = vadd.f32 %v2042, %v2285
        %2287 = vmatprep.mubr.f32.mxu0 0.0
        %2288 = vmatmul.mubr.f32.gmra.mxu0 %v2081
        %v2289 = vpop.f32.mrf.mxu0
        %v2290 = vadd.f32 %v2047, %v2289
        %v2291 = vpop.f32.mrf.mxu0
        %v2292 = vadd.f32 %v2047, %v2291
        %2293 = vmatprep.mubr.f32.mxu0 0.0
        %2294 = vmatmul.mubr.f32.gmra.mxu0 %v2084
        %v2295 = vpop.f32.mrf.mxu0
        %v2296 = vadd.f32 %v2052, %v2295
        %v2297 = vpop.f32.mrf.mxu0
        %v2298 = vadd.f32 %v2052, %v2297
        %2299 = vmatprep.mubr.f32.mxu0 0.0
        %2300 = vmatmul.mubr.f32.gmra.mxu0 %v2087
        %v2301 = vpop.f32.mrf.mxu0
        %v2302 = vadd.f32 %v2057, %v2301
        %v2303 = vpop.f32.mrf.mxu0
        %v2304 = vadd.f32 %v2057, %v2303
        %2305 = vmatprep.mubr.f32.mxu0 0.0
        %2306 = vmatmul.mubr.f32.gmra.mxu0 %v2090
        %v2307 = vpop.f32.mrf.mxu0
        %v2308 = vadd.f32 %v2062, %v2307
        %v2309 = vpop.f32.mrf.mxu0
        %v2310 = vadd.f32 %v2062, %v2309
        %2311 = vmatprep.mubr.f32.mxu0 0.0
        %2312 = vmatmul.mubr.f32.gmra.mxu0 %v2093
        %v2313 = vpop.f32.mrf.mxu0
        %v2314 = vadd.f32 %v2067, %v2313
        %v2315 = vpop.f32.mrf.mxu0
        %v2316 = vadd.f32 %v2067, %v2315
        %2317 = vmatprep.mubr.f32.mxu0 0.0
        %2318 = vmatmul.mubr.f32.gmra.mxu0 %v2096
        %v2319 = vpop.f32.mrf.mxu0
        %v2320 = vadd.f32 %v2072, %v2319
        %v2321 = vpop.f32.mrf.mxu0
        %v2322 = vadd.f32 %v2072, %v2321
        %2323 = vdwg.mxu0
        %2324 = vmatprep.subr.mxu0 0.0
        %2325 = vmatpush1.msra.mxu0 0.0
        %2326 = vmatprep.subr.mxu0 0.0
        %2327 = vmatpush1.msra.mxu0 0.0
        %2328 = vmatprep.subr.mxu0 0.0
        %2329 = vmatpush1.msra.mxu0 0.0
        %2330 = vmatprep.subr.mxu0 0.0
        %2331 = vmatpush1.msra.mxu0 0.0
        %2332 = vmatprep.subr.mxu0 0.0
        %2333 = vmatpush1.msra.mxu0 0.0
        %2334 = vmatprep.subr.mxu0 0.0
        %2335 = vmatpush1.msra.mxu0 0.0
        %2336 = vmatprep.subr.mxu0 0.0
        %2337 = vmatpush1.msra.mxu0 0.0
        %2338 = vmatprep.subr.mxu0 0.0
        %2339 = vmatpush1.msra.mxu0 0.0
        %2340 = vmatprep.subr.mxu0 %v2022
        %2341 = vmatpush1.msra.mxu0 %v2021
        %2342 = vmatprep.subr.mxu0 %v2014
        %2343 = vmatpush1.msra.mxu0 %v2013
        %2344 = vmatprep.subr.mxu0 %v2006
        %2345 = vmatpush1.msra.mxu0 %v2005
        %2346 = vmatprep.subr.mxu0 %v1998
        %2347 = vmatpush1.msra.mxu0 %v1997
        %2348 = vmatprep.subr.mxu0 %v1990
        %2349 = vmatpush1.msra.mxu0 %v1989
        %2350 = vmatprep.subr.mxu0 %v1982
        %2351 = vmatpush1.msra.mxu0 %v1981
        %2352 = vmatprep.subr.mxu0 %v1974
        %2353 = vmatpush1.msra.mxu0 %v1973
        %2354 = vmatprep.subr.mxu0 %v1966
        %2355 = vmatpush1.msra.mxu0 %v1965
        %2356 = vmatprep.subr.mxu0 0.0
        %2357 = vmatpush2.msra.mxu0 0.0
        %2358 = vmatprep.subr.mxu0 0.0
        %2359 = vmatpush2.msra.mxu0 0.0
        %2360 = vmatprep.subr.mxu0 0.0
        %2361 = vmatpush2.msra.mxu0 0.0
        %2362 = vmatprep.subr.mxu0 0.0
        %2363 = vmatpush2.msra.mxu0 0.0
        %2364 = vmatprep.subr.mxu0 0.0
        %2365 = vmatpush2.msra.mxu0 0.0
        %2366 = vmatprep.subr.mxu0 0.0
        %2367 = vmatpush2.msra.mxu0 0.0
        %2368 = vmatprep.subr.mxu0 0.0
        %2369 = vmatpush2.msra.mxu0 0.0
        %2370 = vmatprep.subr.mxu0 0.0
        %2371 = vmatpush2.msra.mxu0 0.0
        %2372 = vmatprep.subr.mxu0 0.0
        %2373 = vmatpush2.msra.mxu0 0.0
        %2374 = vmatprep.subr.mxu0 0.0
        %2375 = vmatpush2.msra.mxu0 0.0
        %2376 = vmatprep.subr.mxu0 0.0
        %2377 = vmatpush2.msra.mxu0 0.0
        %2378 = vmatprep.subr.mxu0 0.0
        %2379 = vmatpush2.msra.mxu0 0.0
        %2380 = vmatprep.subr.mxu0 0.0
        %2381 = vmatpush2.msra.mxu0 0.0
        %2382 = vmatprep.subr.mxu0 0.0
        %2383 = vmatpush2.msra.mxu0 0.0
        %2384 = vmatprep.subr.mxu0 0.0
        %2385 = vmatpush2.msra.mxu0 0.0
        %2386 = vmatprep.subr.mxu0 0.0
        %2387 = vmatpush2.msra.mxu0 0.0
        %2388 = vmatprep.mubr.f32.mxu0 0.0
        %2389 = vmatmul.mubr.f32.gmra.mxu0 %v2075
        %v2390 = vpop.f32.mrf.mxu0
        %v2391 = vadd.f32 %v2037, %v2390
        %v2392 = vpop.f32.mrf.mxu0
        %v2393 = vadd.f32 %v2037, %v2392
        %2394 = vmatprep.mubr.f32.mxu0 0.0
        %2395 = vmatmul.mubr.f32.gmra.mxu0 %v2078
        %v2396 = vpop.f32.mrf.mxu0
        %v2397 = vadd.f32 %v2042, %v2396
        %v2398 = vpop.f32.mrf.mxu0
        %v2399 = vadd.f32 %v2042, %v2398
        %2400 = vmatprep.mubr.f32.mxu0 0.0
        %2401 = vmatmul.mubr.f32.gmra.mxu0 %v2081
        %v2402 = vpop.f32.mrf.mxu0
        %v2403 = vadd.f32 %v2047, %v2402
        %v2404 = vpop.f32.mrf.mxu0
        %v2405 = vadd.f32 %v2047, %v2404
        %2406 = vmatprep.mubr.f32.mxu0 0.0
        %2407 = vmatmul.mubr.f32.gmra.mxu0 %v2084
        %v2408 = vpop.f32.mrf.mxu0
        %v2409 = vadd.f32 %v2052, %v2408
        %v2410 = vpop.f32.mrf.mxu0
        %v2411 = vadd.f32 %v2052, %v2410
        %2412 = vmatprep.mubr.f32.mxu0 0.0
        %2413 = vmatmul.mubr.f32.gmra.mxu0 %v2087
        %v2414 = vpop.f32.mrf.mxu0
        %v2415 = vadd.f32 %v2057, %v2414
        %v2416 = vpop.f32.mrf.mxu0
        %v2417 = vadd.f32 %v2057, %v2416
        %2418 = vmatprep.mubr.f32.mxu0 0.0
        %2419 = vmatmul.mubr.f32.gmra.mxu0 %v2090
        %v2420 = vpop.f32.mrf.mxu0
        %v2421 = vadd.f32 %v2062, %v2420
        %v2422 = vpop.f32.mrf.mxu0
        %v2423 = vadd.f32 %v2062, %v2422
        %2424 = vmatprep.mubr.f32.mxu0 0.0
        %2425 = vmatmul.mubr.f32.gmra.mxu0 %v2093
        %v2426 = vpop.f32.mrf.mxu0
        %v2427 = vadd.f32 %v2067, %v2426
        %v2428 = vpop.f32.mrf.mxu0
        %v2429 = vadd.f32 %v2067, %v2428
        %2430 = vmatprep.mubr.f32.mxu0 0.0
        %2431 = vmatmul.mubr.f32.gmra.mxu0 %v2096
        %v2432 = vpop.f32.mrf.mxu0
        %v2433 = vadd.f32 %v2072, %v2432
        %v2434 = vpop.f32.mrf.mxu0
        %v2435 = vadd.f32 %v2072, %v2434
        %2436 = vdwg.mxu0
        %2437 = vmatprep.subr.mxu0 0.0
        %2438 = vmatpush1.msra.mxu0 0.0
        %2439 = vmatprep.subr.mxu0 0.0
        %2440 = vmatpush1.msra.mxu0 0.0
        %2441 = vmatprep.subr.mxu0 0.0
        %2442 = vmatpush1.msra.mxu0 0.0
        %2443 = vmatprep.subr.mxu0 0.0
        %2444 = vmatpush1.msra.mxu0 0.0
        %2445 = vmatprep.subr.mxu0 0.0
        %2446 = vmatpush1.msra.mxu0 0.0
        %2447 = vmatprep.subr.mxu0 0.0
        %2448 = vmatpush1.msra.mxu0 0.0
        %2449 = vmatprep.subr.mxu0 0.0
        %2450 = vmatpush1.msra.mxu0 0.0
        %2451 = vmatprep.subr.mxu0 0.0
        %2452 = vmatpush1.msra.mxu0 0.0
        %2453 = vmatprep.subr.mxu0 %v2024
        %2454 = vmatpush1.msra.mxu0 %v2023
        %2455 = vmatprep.subr.mxu0 %v2016
        %2456 = vmatpush1.msra.mxu0 %v2015
        %2457 = vmatprep.subr.mxu0 %v2008
        %2458 = vmatpush1.msra.mxu0 %v2007
        %2459 = vmatprep.subr.mxu0 %v2000
        %2460 = vmatpush1.msra.mxu0 %v1999
        %2461 = vmatprep.subr.mxu0 %v1992
        %2462 = vmatpush1.msra.mxu0 %v1991
        %2463 = vmatprep.subr.mxu0 %v1984
        %2464 = vmatpush1.msra.mxu0 %v1983
        %2465 = vmatprep.subr.mxu0 %v1976
        %2466 = vmatpush1.msra.mxu0 %v1975
        %2467 = vmatprep.subr.mxu0 %v1968
        %2468 = vmatpush1.msra.mxu0 %v1967
        %2469 = vmatprep.subr.mxu0 0.0
        %2470 = vmatpush2.msra.mxu0 0.0
        %2471 = vmatprep.subr.mxu0 0.0
        %2472 = vmatpush2.msra.mxu0 0.0
        %2473 = vmatprep.subr.mxu0 0.0
        %2474 = vmatpush2.msra.mxu0 0.0
        %2475 = vmatprep.subr.mxu0 0.0
        %2476 = vmatpush2.msra.mxu0 0.0
        %2477 = vmatprep.subr.mxu0 0.0
        %2478 = vmatpush2.msra.mxu0 0.0
        %2479 = vmatprep.subr.mxu0 0.0
        %2480 = vmatpush2.msra.mxu0 0.0
        %2481 = vmatprep.subr.mxu0 0.0
        %2482 = vmatpush2.msra.mxu0 0.0
        %2483 = vmatprep.subr.mxu0 0.0
        %2484 = vmatpush2.msra.mxu0 0.0
        %2485 = vmatprep.subr.mxu0 0.0
        %2486 = vmatpush2.msra.mxu0 0.0
        %2487 = vmatprep.subr.mxu0 0.0
        %2488 = vmatpush2.msra.mxu0 0.0
        %2489 = vmatprep.subr.mxu0 0.0
        %2490 = vmatpush2.msra.mxu0 0.0
        %2491 = vmatprep.subr.mxu0 0.0
        %2492 = vmatpush2.msra.mxu0 0.0
        %2493 = vmatprep.subr.mxu0 0.0
        %2494 = vmatpush2.msra.mxu0 0.0
        %2495 = vmatprep.subr.mxu0 0.0
        %2496 = vmatpush2.msra.mxu0 0.0
        %2497 = vmatprep.subr.mxu0 0.0
        %2498 = vmatpush2.msra.mxu0 0.0
        %2499 = vmatprep.subr.mxu0 0.0
        %2500 = vmatpush2.msra.mxu0 0.0
        %2501 = vmatprep.mubr.f32.mxu0 0.0
        %2502 = vmatmul.mubr.f32.gmra.mxu0 %v2075
        %v2503 = vpop.f32.mrf.mxu0
        %v2504 = vadd.f32 %v2037, %v2503
        %v2505 = vpop.f32.mrf.mxu0
        %v2506 = vadd.f32 %v2037, %v2505
        %2507 = vmatprep.mubr.f32.mxu0 0.0
        %2508 = vmatmul.mubr.f32.gmra.mxu0 %v2078
        %v2509 = vpop.f32.mrf.mxu0
        %v2510 = vadd.f32 %v2042, %v2509
        %v2511 = vpop.f32.mrf.mxu0
        %v2512 = vadd.f32 %v2042, %v2511
        %2513 = vmatprep.mubr.f32.mxu0 0.0
        %2514 = vmatmul.mubr.f32.gmra.mxu0 %v2081
        %v2515 = vpop.f32.mrf.mxu0
        %v2516 = vadd.f32 %v2047, %v2515
        %v2517 = vpop.f32.mrf.mxu0
        %v2518 = vadd.f32 %v2047, %v2517
        %2519 = vmatprep.mubr.f32.mxu0 0.0
        %2520 = vmatmul.mubr.f32.gmra.mxu0 %v2084
        %v2521 = vpop.f32.mrf.mxu0
        %v2522 = vadd.f32 %v2052, %v2521
        %v2523 = vpop.f32.mrf.mxu0
        %v2524 = vadd.f32 %v2052, %v2523
        %2525 = vmatprep.mubr.f32.mxu0 0.0
        %2526 = vmatmul.mubr.f32.gmra.mxu0 %v2087
        %v2527 = vpop.f32.mrf.mxu0
        %v2528 = vadd.f32 %v2057, %v2527
        %v2529 = vpop.f32.mrf.mxu0
        %v2530 = vadd.f32 %v2057, %v2529
        %2531 = vmatprep.mubr.f32.mxu0 0.0
        %2532 = vmatmul.mubr.f32.gmra.mxu0 %v2090
        %v2533 = vpop.f32.mrf.mxu0
        %v2534 = vadd.f32 %v2062, %v2533
        %v2535 = vpop.f32.mrf.mxu0
        %v2536 = vadd.f32 %v2062, %v2535
        %2537 = vmatprep.mubr.f32.mxu0 0.0
        %2538 = vmatmul.mubr.f32.gmra.mxu0 %v2093
        %v2539 = vpop.f32.mrf.mxu0
        %v2540 = vadd.f32 %v2067, %v2539
        %v2541 = vpop.f32.mrf.mxu0
        %v2542 = vadd.f32 %v2067, %v2541
        %2543 = vmatprep.mubr.f32.mxu0 0.0
        %2544 = vmatmul.mubr.f32.gmra.mxu0 %v2096
        %v2545 = vpop.f32.mrf.mxu0
        %v2546 = vadd.f32 %v2072, %v2545
        %v2547 = vpop.f32.mrf.mxu0
        %v2548 = vadd.f32 %v2072, %v2547
        %2549 = vdwg.mxu0
        %v2550 = vtanh.pop %v2165
        %v2551 = vtanh.pop %v2167
        %v2552 = vtanh.pop %v2278
        %v2553 = vtanh.pop %v2280
        %v2554 = vtanh.pop %v2391
        %v2555 = vtanh.pop %v2393
        %v2556 = vtanh.pop %v2504
        %v2557 = vtanh.pop %v2506
        %v2558 = vtanh.pop %v2171
        %v2559 = vtanh.pop %v2173
        %v2560 = vtanh.pop %v2284
        %v2561 = vtanh.pop %v2286
        %v2562 = vtanh.pop %v2397
        %v2563 = vtanh.pop %v2399
        %v2564 = vtanh.pop %v2510
        %v2565 = vtanh.pop %v2512
        %v2566 = vtanh.pop %v2177
        %v2567 = vtanh.pop %v2179
        %v2568 = vtanh.pop %v2290
        %v2569 = vtanh.pop %v2292
        %v2570 = vtanh.pop %v2403
        %v2571 = vtanh.pop %v2405
        %v2572 = vtanh.pop %v2516
        %v2573 = vtanh.pop %v2518
        %v2574 = vtanh.pop %v2183
        %v2575 = vtanh.pop %v2185
        %v2576 = vtanh.pop %v2296
        %v2577 = vtanh.pop %v2298
        %v2578 = vtanh.pop %v2409
        %v2579 = vtanh.pop %v2411
        %v2580 = vtanh.pop %v2522
        %v2581 = vtanh.pop %v2524
        %v2582 = vtanh.pop %v2189
        %v2583 = vtanh.pop %v2191
        %v2584 = vtanh.pop %v2302
        %v2585 = vtanh.pop %v2304
        %v2586 = vtanh.pop %v2415
        %v2587 = vtanh.pop %v2417
        %v2588 = vtanh.pop %v2528
        %v2589 = vtanh.pop %v2530
        %v2590 = vtanh.pop %v2195
        %v2591 = vtanh.pop %v2197
        %v2592 = vtanh.pop %v2308
        %v2593 = vtanh.pop %v2310
        %v2594 = vtanh.pop %v2421
        %v2595 = vtanh.pop %v2423
        %v2596 = vtanh.pop %v2534
        %v2597 = vtanh.pop %v2536
        %v2598 = vtanh.pop %v2201
        %v2599 = vtanh.pop %v2203
        %v2600 = vtanh.pop %v2314
        %v2601 = vtanh.pop %v2316
        %v2602 = vtanh.pop %v2427
        %v2603 = vtanh.pop %v2429
        %v2604 = vtanh.pop %v2540
        %v2605 = vtanh.pop %v2542
        %v2606 = vtanh.pop %v2207
        %v2607 = vtanh.pop %v2209
        %v2608 = vtanh.pop %v2320
        %v2609 = vtanh.pop %v2322
        %v2610 = vtanh.pop %v2433
        %v2611 = vtanh.pop %v2435
        %v2612 = vtanh.pop %v2546
        %v2613 = vtanh.pop %v2548
        %v2614 = vld [vmem:[%s4] sm:$0x1]
        %2616 = vset.pattern.permute.xlu0 0
        %2617 = vperm.xlu0 %2616, %v268
        %v2618 = vpop.permute.xlu0 %2617
        %v2621 = vsel %vm895, %v2614, 0
        %2623 = vmatprep.subr.mxu0 0.0
        %2624 = vmatpush1.msra.mxu0 0.0
        %2625 = vmatprep.subr.mxu0 0.0
        %2626 = vmatpush1.msra.mxu0 0.0
        %2627 = vmatprep.subr.mxu0 0.0
        %2628 = vmatpush1.msra.mxu0 0.0
        %2629 = vmatprep.subr.mxu0 0.0
        %2630 = vmatpush1.msra.mxu0 0.0
        %2631 = vmatprep.subr.mxu0 0.0
        %2632 = vmatpush1.msra.mxu0 0.0
        %2633 = vmatprep.subr.mxu0 0.0
        %2634 = vmatpush1.msra.mxu0 0.0
        %2635 = vmatprep.subr.mxu0 0.0
        %2636 = vmatpush1.msra.mxu0 0.0
        %2637 = vmatprep.subr.mxu0 0.0
        %2638 = vmatpush1.msra.mxu0 0.0
        %2639 = vmatprep.subr.mxu0 %v2607
        %2640 = vmatpush1.msra.mxu0 %v2606
        %2641 = vmatprep.subr.mxu0 %v2599
        %2642 = vmatpush1.msra.mxu0 %v2598
        %2643 = vmatprep.subr.mxu0 %v2591
        %2644 = vmatpush1.msra.mxu0 %v2590
        %2645 = vmatprep.subr.mxu0 %v2583
        %2646 = vmatpush1.msra.mxu0 %v2582
        %2647 = vmatprep.subr.mxu0 %v2575
        %2648 = vmatpush1.msra.mxu0 %v2574
        %2649 = vmatprep.subr.mxu0 %v2567
        %2650 = vmatpush1.msra.mxu0 %v2566
        %2651 = vmatprep.subr.mxu0 %v2559
        %2652 = vmatpush1.msra.mxu0 %v2558
        %2653 = vmatprep.subr.mxu0 %v2551
        %2654 = vmatpush1.msra.mxu0 %v2550
        %2655 = vmatprep.subr.mxu0 0.0
        %2656 = vmatpush2.msra.mxu0 0.0
        %2657 = vmatprep.subr.mxu0 0.0
        %2658 = vmatpush2.msra.mxu0 0.0
        %2659 = vmatprep.subr.mxu0 0.0
        %2660 = vmatpush2.msra.mxu0 0.0
        %2661 = vmatprep.subr.mxu0 0.0
        %2662 = vmatpush2.msra.mxu0 0.0
        %2663 = vmatprep.subr.mxu0 0.0
        %2664 = vmatpush2.msra.mxu0 0.0
        %2665 = vmatprep.subr.mxu0 0.0
        %2666 = vmatpush2.msra.mxu0 0.0
        %2667 = vmatprep.subr.mxu0 0.0
        %2668 = vmatpush2.msra.mxu0 0.0
        %2669 = vmatprep.subr.mxu0 0.0
        %2670 = vmatpush2.msra.mxu0 0.0
        %2671 = vmatprep.subr.mxu0 0.0
        %2672 = vmatpush2.msra.mxu0 0.0
        %2673 = vmatprep.subr.mxu0 0.0
        %2674 = vmatpush2.msra.mxu0 0.0
        %2675 = vmatprep.subr.mxu0 0.0
        %2676 = vmatpush2.msra.mxu0 0.0
        %2677 = vmatprep.subr.mxu0 0.0
        %2678 = vmatpush2.msra.mxu0 0.0
        %2679 = vmatprep.subr.mxu0 0.0
        %2680 = vmatpush2.msra.mxu0 0.0
        %2681 = vmatprep.subr.mxu0 0.0
        %2682 = vmatpush2.msra.mxu0 0.0
        %2683 = vmatprep.subr.mxu0 0.0
        %2684 = vmatpush2.msra.mxu0 0.0
        %2685 = vmatprep.subr.mxu0 0.0
        %2686 = vmatpush2.msra.mxu0 0.0
        %2687 = vmatprep.mubr.f32.mxu0 0.0
        %2688 = vmatmul.mubr.f32.gmra.mxu0 %v2621
        %v2689 = vpop.f32.mrf.mxu0
        %v2690 = vadd.f32 %v2618, %v2689
        %v2691 = vpop.f32.mrf.mxu0
        %v2692 = vadd.f32 %v2618, %v2691
        %2693 = vdwg.mxu0
        %2694 = vmatprep.subr.mxu0 0.0
        %2695 = vmatpush1.msra.mxu0 0.0
        %2696 = vmatprep.subr.mxu0 0.0
        %2697 = vmatpush1.msra.mxu0 0.0
        %2698 = vmatprep.subr.mxu0 0.0
        %2699 = vmatpush1.msra.mxu0 0.0
        %2700 = vmatprep.subr.mxu0 0.0
        %2701 = vmatpush1.msra.mxu0 0.0
        %2702 = vmatprep.subr.mxu0 0.0
        %2703 = vmatpush1.msra.mxu0 0.0
        %2704 = vmatprep.subr.mxu0 0.0
        %2705 = vmatpush1.msra.mxu0 0.0
        %2706 = vmatprep.subr.mxu0 0.0
        %2707 = vmatpush1.msra.mxu0 0.0
        %2708 = vmatprep.subr.mxu0 0.0
        %2709 = vmatpush1.msra.mxu0 0.0
        %2710 = vmatprep.subr.mxu0 %v2609
        %2711 = vmatpush1.msra.mxu0 %v2608
        %2712 = vmatprep.subr.mxu0 %v2601
        %2713 = vmatpush1.msra.mxu0 %v2600
        %2714 = vmatprep.subr.mxu0 %v2593
        %2715 = vmatpush1.msra.mxu0 %v2592
        %2716 = vmatprep.subr.mxu0 %v2585
        %2717 = vmatpush1.msra.mxu0 %v2584
        %2718 = vmatprep.subr.mxu0 %v2577
        %2719 = vmatpush1.msra.mxu0 %v2576
        %2720 = vmatprep.subr.mxu0 %v2569
        %2721 = vmatpush1.msra.mxu0 %v2568
        %2722 = vmatprep.subr.mxu0 %v2561
        %2723 = vmatpush1.msra.mxu0 %v2560
        %2724 = vmatprep.subr.mxu0 %v2553
        %2725 = vmatpush1.msra.mxu0 %v2552
        %2726 = vmatprep.subr.mxu0 0.0
        %2727 = vmatpush2.msra.mxu0 0.0
        %2728 = vmatprep.subr.mxu0 0.0
        %2729 = vmatpush2.msra.mxu0 0.0
        %2730 = vmatprep.subr.mxu0 0.0
        %2731 = vmatpush2.msra.mxu0 0.0
        %2732 = vmatprep.subr.mxu0 0.0
        %2733 = vmatpush2.msra.mxu0 0.0
        %2734 = vmatprep.subr.mxu0 0.0
        %2735 = vmatpush2.msra.mxu0 0.0
        %2736 = vmatprep.subr.mxu0 0.0
        %2737 = vmatpush2.msra.mxu0 0.0
        %2738 = vmatprep.subr.mxu0 0.0
        %2739 = vmatpush2.msra.mxu0 0.0
        %2740 = vmatprep.subr.mxu0 0.0
        %2741 = vmatpush2.msra.mxu0 0.0
        %2742 = vmatprep.subr.mxu0 0.0
        %2743 = vmatpush2.msra.mxu0 0.0
        %2744 = vmatprep.subr.mxu0 0.0
        %2745 = vmatpush2.msra.mxu0 0.0
        %2746 = vmatprep.subr.mxu0 0.0
        %2747 = vmatpush2.msra.mxu0 0.0
        %2748 = vmatprep.subr.mxu0 0.0
        %2749 = vmatpush2.msra.mxu0 0.0
        %2750 = vmatprep.subr.mxu0 0.0
        %2751 = vmatpush2.msra.mxu0 0.0
        %2752 = vmatprep.subr.mxu0 0.0
        %2753 = vmatpush2.msra.mxu0 0.0
        %2754 = vmatprep.subr.mxu0 0.0
        %2755 = vmatpush2.msra.mxu0 0.0
        %2756 = vmatprep.subr.mxu0 0.0
        %2757 = vmatpush2.msra.mxu0 0.0
        %2758 = vmatprep.mubr.f32.mxu0 0.0
        %2759 = vmatmul.mubr.f32.gmra.mxu0 %v2621
        %v2760 = vpop.f32.mrf.mxu0
        %v2761 = vadd.f32 %v2618, %v2760
        %v2762 = vpop.f32.mrf.mxu0
        %v2763 = vadd.f32 %v2618, %v2762
        %2764 = vdwg.mxu0
        %2765 = vmatprep.subr.mxu0 0.0
        %2766 = vmatpush1.msra.mxu0 0.0
        %2767 = vmatprep.subr.mxu0 0.0
        %2768 = vmatpush1.msra.mxu0 0.0
        %2769 = vmatprep.subr.mxu0 0.0
        %2770 = vmatpush1.msra.mxu0 0.0
        %2771 = vmatprep.subr.mxu0 0.0
        %2772 = vmatpush1.msra.mxu0 0.0
        %2773 = vmatprep.subr.mxu0 0.0
        %2774 = vmatpush1.msra.mxu0 0.0
        %2775 = vmatprep.subr.mxu0 0.0
        %2776 = vmatpush1.msra.mxu0 0.0
        %2777 = vmatprep.subr.mxu0 0.0
        %2778 = vmatpush1.msra.mxu0 0.0
        %2779 = vmatprep.subr.mxu0 0.0
        %2780 = vmatpush1.msra.mxu0 0.0
        %2781 = vmatprep.subr.mxu0 %v2611
        %2782 = vmatpush1.msra.mxu0 %v2610
        %2783 = vmatprep.subr.mxu0 %v2603
        %2784 = vmatpush1.msra.mxu0 %v2602
        %2785 = vmatprep.subr.mxu0 %v2595
        %2786 = vmatpush1.msra.mxu0 %v2594
        %2787 = vmatprep.subr.mxu0 %v2587
        %2788 = vmatpush1.msra.mxu0 %v2586
        %2789 = vmatprep.subr.mxu0 %v2579
        %2790 = vmatpush1.msra.mxu0 %v2578
        %2791 = vmatprep.subr.mxu0 %v2571
        %2792 = vmatpush1.msra.mxu0 %v2570
        %2793 = vmatprep.subr.mxu0 %v2563
        %2794 = vmatpush1.msra.mxu0 %v2562
        %2795 = vmatprep.subr.mxu0 %v2555
        %2796 = vmatpush1.msra.mxu0 %v2554
        %2797 = vmatprep.subr.mxu0 0.0
        %2798 = vmatpush2.msra.mxu0 0.0
        %2799 = vmatprep.subr.mxu0 0.0
        %2800 = vmatpush2.msra.mxu0 0.0
        %2801 = vmatprep.subr.mxu0 0.0
        %2802 = vmatpush2.msra.mxu0 0.0
        %2803 = vmatprep.subr.mxu0 0.0
        %2804 = vmatpush2.msra.mxu0 0.0
        %2805 = vmatprep.subr.mxu0 0.0
        %2806 = vmatpush2.msra.mxu0 0.0
        %2807 = vmatprep.subr.mxu0 0.0
        %2808 = vmatpush2.msra.mxu0 0.0
        %2809 = vmatprep.subr.mxu0 0.0
        %2810 = vmatpush2.msra.mxu0 0.0
        %2811 = vmatprep.subr.mxu0 0.0
        %2812 = vmatpush2.msra.mxu0 0.0
        %2813 = vmatprep.subr.mxu0 0.0
        %2814 = vmatpush2.msra.mxu0 0.0
        %2815 = vmatprep.subr.mxu0 0.0
        %2816 = vmatpush2.msra.mxu0 0.0
        %2817 = vmatprep.subr.mxu0 0.0
        %2818 = vmatpush2.msra.mxu0 0.0
        %2819 = vmatprep.subr.mxu0 0.0
        %2820 = vmatpush2.msra.mxu0 0.0
        %2821 = vmatprep.subr.mxu0 0.0
        %2822 = vmatpush2.msra.mxu0 0.0
        %2823 = vmatprep.subr.mxu0 0.0
        %2824 = vmatpush2.msra.mxu0 0.0
        %2825 = vmatprep.subr.mxu0 0.0
        %2826 = vmatpush2.msra.mxu0 0.0
        %2827 = vmatprep.subr.mxu0 0.0
        %2828 = vmatpush2.msra.mxu0 0.0
        %2829 = vmatprep.mubr.f32.mxu0 0.0
        %2830 = vmatmul.mubr.f32.gmra.mxu0 %v2621
        %v2831 = vpop.f32.mrf.mxu0
        %v2832 = vadd.f32 %v2618, %v2831
        %v2833 = vpop.f32.mrf.mxu0
        %v2834 = vadd.f32 %v2618, %v2833
        %2835 = vdwg.mxu0
        %2836 = vmatprep.subr.mxu0 0.0
        %2837 = vmatpush1.msra.mxu0 0.0
        %2838 = vmatprep.subr.mxu0 0.0
        %2839 = vmatpush1.msra.mxu0 0.0
        %2840 = vmatprep.subr.mxu0 0.0
        %2841 = vmatpush1.msra.mxu0 0.0
        %2842 = vmatprep.subr.mxu0 0.0
        %2843 = vmatpush1.msra.mxu0 0.0
        %2844 = vmatprep.subr.mxu0 0.0
        %2845 = vmatpush1.msra.mxu0 0.0
        %2846 = vmatprep.subr.mxu0 0.0
        %2847 = vmatpush1.msra.mxu0 0.0
        %2848 = vmatprep.subr.mxu0 0.0
        %2849 = vmatpush1.msra.mxu0 0.0
        %2850 = vmatprep.subr.mxu0 0.0
        %2851 = vmatpush1.msra.mxu0 0.0
        %2852 = vmatprep.subr.mxu0 %v2613
        %2853 = vmatpush1.msra.mxu0 %v2612
        %2854 = vmatprep.subr.mxu0 %v2605
        %2855 = vmatpush1.msra.mxu0 %v2604
        %2856 = vmatprep.subr.mxu0 %v2597
        %2857 = vmatpush1.msra.mxu0 %v2596
        %2858 = vmatprep.subr.mxu0 %v2589
        %2859 = vmatpush1.msra.mxu0 %v2588
        %2860 = vmatprep.subr.mxu0 %v2581
        %2861 = vmatpush1.msra.mxu0 %v2580
        %2862 = vmatprep.subr.mxu0 %v2573
        %2863 = vmatpush1.msra.mxu0 %v2572
        %2864 = vmatprep.subr.mxu0 %v2565
        %2865 = vmatpush1.msra.mxu0 %v2564
        %2866 = vmatprep.subr.mxu0 %v2557
        %2867 = vmatpush1.msra.mxu0 %v2556
        %2868 = vmatprep.subr.mxu0 0.0
        %2869 = vmatpush2.msra.mxu0 0.0
        %2870 = vmatprep.subr.mxu0 0.0
        %2871 = vmatpush2.msra.mxu0 0.0
        %2872 = vmatprep.subr.mxu0 0.0
        %2873 = vmatpush2.msra.mxu0 0.0
        %2874 = vmatprep.subr.mxu0 0.0
        %2875 = vmatpush2.msra.mxu0 0.0
        %2876 = vmatprep.subr.mxu0 0.0
        %2877 = vmatpush2.msra.mxu0 0.0
        %2878 = vmatprep.subr.mxu0 0.0
        %2879 = vmatpush2.msra.mxu0 0.0
        %2880 = vmatprep.subr.mxu0 0.0
        %2881 = vmatpush2.msra.mxu0 0.0
        %2882 = vmatprep.subr.mxu0 0.0
        %2883 = vmatpush2.msra.mxu0 0.0
        %2884 = vmatprep.subr.mxu0 0.0
        %2885 = vmatpush2.msra.mxu0 0.0
        %2886 = vmatprep.subr.mxu0 0.0
        %2887 = vmatpush2.msra.mxu0 0.0
        %2888 = vmatprep.subr.mxu0 0.0
        %2889 = vmatpush2.msra.mxu0 0.0
        %2890 = vmatprep.subr.mxu0 0.0
        %2891 = vmatpush2.msra.mxu0 0.0
        %2892 = vmatprep.subr.mxu0 0.0
        %2893 = vmatpush2.msra.mxu0 0.0
        %2894 = vmatprep.subr.mxu0 0.0
        %2895 = vmatpush2.msra.mxu0 0.0
        %2896 = vmatprep.subr.mxu0 0.0
        %2897 = vmatpush2.msra.mxu0 0.0
        %2898 = vmatprep.subr.mxu0 0.0
        %2899 = vmatpush2.msra.mxu0 0.0
        %2900 = vmatprep.mubr.f32.mxu0 0.0
        %2901 = vmatmul.mubr.f32.gmra.mxu0 %v2621
        %v2902 = vpop.f32.mrf.mxu0
        %v2903 = vadd.f32 %v2618, %v2902
        %v2904 = vpop.f32.mrf.mxu0
        %v2905 = vadd.f32 %v2618, %v2904
        %2906 = vdwg.mxu0
        %v2915 = vcombine.low %v2690, %v2692
        %v2916 = vcombine.low %v2761, %v2763
        %v2917 = vcombine.low %v2832, %v2834
        %v2918 = vcombine.low %v2903, %v2905
        %v2920 = vunpack.c.l.s4 1966171168
        %v2921 = vunpack.c.0.s8 %v2920
        %v2922 = vlaneseq
        %v2923 = vshrl.u32 %v2922, 7
        %v2924 = vsub.s32 %v2921, %v2923
        %v2925 = vrot.slane %v2915, %v2924
        %v2927 = vunpack.c.l.s4 1966171168
        %v2928 = vunpack.c.0.s8 %v2927
        %v2929 = vlaneseq
        %v2930 = vshrl.u32 %v2929, 7
        %v2931 = vsub.s32 %v2928, %v2930
        %v2932 = vrot.slane %v2916, %v2931
        %v2934 = vunpack.c.l.s4 1966171168
        %v2935 = vunpack.c.0.s8 %v2934
        %v2936 = vlaneseq
        %v2937 = vshrl.u32 %v2936, 7
        %v2938 = vsub.s32 %v2935, %v2937
        %v2939 = vrot.slane %v2917, %v2938
        %v2941 = vunpack.c.l.s4 1966171168
        %v2942 = vunpack.c.0.s8 %v2941
        %v2943 = vlaneseq
        %v2944 = vshrl.u32 %v2943, 7
        %v2945 = vsub.s32 %v2942, %v2944
        %v2946 = vrot.slane %v2918, %v2945
        %v2947 = vcombine.low %v2925, %v2932
        %v2948 = vcombine.low %v2939, %v2946
        %v2950 = vunpack.c.l.s4 1966171168
        %v2951 = vunpack.c.0.s8 %v2950
        %v2952 = vlaneseq
        %v2953 = vshrl.u32 %v2952, 7
        %v2954 = vsub.s32 %v2951, %v2953
        %v2955 = vrot.slane %v2947, %v2954
        %v2957 = vunpack.c.l.s4 1966171168
        %v2958 = vunpack.c.0.s8 %v2957
        %v2959 = vlaneseq
        %v2960 = vshrl.u32 %v2959, 7
        %v2961 = vsub.s32 %v2958, %v2960
        %v2962 = vrot.slane %v2948, %v2961
        %v2963 = vcombine.low %v2955, %v2962
        %2965 = vst [vmem:[%s218] sm:$0xff] %v2963
        %s2966 = sand.u32 %s137, 1
        %s2967 = scalar_lea.sflag [#allocation3], %s2966
        %s2968 = sand.u32 %s137, 1
        %s2969 = smul.addr %s2968, 8
        %s2970 = scalar_lea.vmem [#allocation2], %s2969
        // Predicated region
        $region41: #{net_forward.1} parent=39 // pred_check
          %p2971 = pneg %p147
        $region42: #{net_forward.1} parent=39 // pred_check_branch
          %2973 = sbr.rel (%p2971) target = $region44
        $region43: #{net_forward.1} parent=39 // pred_region
          %s2974 = smul.u32 8, %s19
          %s2976 = ssub.s32 128, 128
          %2977 = vsyncadd %s2967, %s2976
          %s2978 = smul.addr %s2974, 16
          %s2979 = scalar_lea.hbm %s5, %s2978
          %s2981 = sshll.u32 %s2970, 4
          %s2982 = int_to_ptr.vmem [resolvable:$true] %s2981
          %2984 = dma.vmem_to_hbm [thread:$0]  %s2982, 128, %s2979, %s2967
        $region44: #{net_forward.1} parent=39 // pred_fallthru
          _
      $region40: #{net_forward.1} parent=5 // pred_fallthru
        _
      %p2985 = scmp.le.s32.totalorder 2, %s14
      // Predicated region
      $region45: #{net_forward.1} parent=5 // pred_check
        %p2986 = pneg %p2985
      $region46: #{net_forward.1} parent=5 // pred_check_branch
        %2988 = sbr.rel (%p2986) target = $region48
      $region47: #{net_forward.1} parent=5 // pred_region
        %s2989 = ssub.s32 %s14, 2
        // Predicated region
        $region49: #{net_forward.1} parent=47 // pred_check
          %p2990 = pneg %p153
        $region50: #{net_forward.1} parent=47 // pred_check_branch
          %2992 = sbr.rel (%p2990) target = $region52
        $region51: #{net_forward.1} parent=47 // pred_region
          %s2993 = sand.u32 %s138, 1
          %s2994 = scalar_lea.sflag [#allocation3], %s2993
          %s2995 = sand.u32 %s138, 1
          %s2996 = smul.addr %s2995, 8
          %s2997 = scalar_lea.vmem [#allocation2], %s2996
          %2998 = dma.done %s2994, 128
        $region52: #{net_forward.1} parent=47 // pred_fallthru
          _
      $region48: #{net_forward.1} parent=5 // pred_fallthru
        _
    $region6: #{net_forward.1} parent=1 // loop_footer
      %s18 = sadd.s32 1, %s14
    $region7: #{net_forward.1} parent=1 // loop_footer_branch
      %13 = sbr.rel target = $region3
    $region8: #{net_forward.1} parent=1 // loop_exit
      _
    %2999 = vsyncpa [#allocation3], 1
    %s3000 = scalar_lea.sflag [#allocation3], 1
    %3001 = vsyncpa %s3000, 1

</llo_original>
